<compile_context>
chip_gen: v5e
topology: v5e:2x2
jax: 0.10.0
libtpu: 0.0.40
codegen_flags: <defaults>
</compile_context>

<pallas_src>
import functools

import jax
import jax.numpy as jnp
from jax.experimental import pallas as pl
from jax.experimental.pallas import tpu as pltpu

BN_EPS = 1e-3
LEAKY_SLOPE = 0.1
LANE = 128
SUBLANE = 16          # works for f32 (8) and packed bf16 (16) second-minor tiling
NSPLIT = 2            # 2-way "parallel" split of the pass-1 reduction (v7x megacore)


def _round_up(x, n):
    return (x + n - 1) // n * n


def _vmem_limit_bytes():
    """~75% of physical VMEM, capped at 100 MiB; safe fallback if query unsupported."""
    try:
        cap = int(pltpu.get_tpu_info().vmem_capacity_bytes)
        return int(min(cap * 3 // 4, 100 * 1024 * 1024))
    except Exception:
        return 32 * 1024 * 1024


_VMEM_LIMIT = _vmem_limit_bytes()


def _probe_single_buffer_bcast():
    """Check that BlockSpec(pipeline_mode=pl.Buffered(1)) lowers on this install."""
    if not hasattr(pl, "Buffered"):
        return False

    def _k(x_ref, o_ref):
        o_ref[...] = x_ref[...] + 1.0

    try:
        spec = pl.BlockSpec((8, LANE), lambda i: (0, 0), pipeline_mode=pl.Buffered(1))
        fn = pl.pallas_call(
            _k,
            out_shape=jax.ShapeDtypeStruct((16, LANE), jnp.float32),
            grid=(2,),
            in_specs=[spec],
            out_specs=pl.BlockSpec((8, LANE), lambda i: (i, 0)),
        )
        jax.block_until_ready(fn(jnp.zeros((8, LANE), jnp.float32)))
        return True
    except Exception:
        return False


_BCAST_SINGLE_BUFFER = _probe_single_buffer_bcast()


def _bcast_spec(block_shape, index_map):
    """Spec for operands whose block never changes across the grid (weights, scale/shift).

    Single-buffer them when supported: their index_map is constant, so double-buffering
    buys nothing and only doubles VMEM footprint (critical on v7x's 64 MiB part)."""
    if _BCAST_SINGLE_BUFFER:
        return pl.BlockSpec(block_shape, index_map, pipeline_mode=pl.Buffered(1))
    return pl.BlockSpec(block_shape, index_map)


# ---------------------------------------------------------------------------
# Pass 1 kernels: conv matmul tile + per-channel sum / sum-of-squares (BN stats).
# Grid = (NSPLIT "parallel", M-tiles "arbitrary"); stats blocks are resident per split.
# ---------------------------------------------------------------------------
def _stats_store_kernel(patches_ref, w_ref, conv_ref, sum_ref, sumsq_ref):
    @pl.when(pl.program_id(1) == 0)
    def _():
        sum_ref[...] = jnp.zeros_like(sum_ref)
        sumsq_ref[...] = jnp.zeros_like(sumsq_ref)

    conv = jnp.dot(patches_ref[...], w_ref[...], preferred_element_type=jnp.float32)
    conv_ref[...] = conv.astype(conv_ref.dtype)                     # reused by pass 2
    # (1, Cout_p) partial sums, broadcast-replicated over the 8 resident sublanes.
    sum_ref[...] += jnp.sum(conv, axis=0, keepdims=True)
    sumsq_ref[...] += jnp.sum(conv * conv, axis=0, keepdims=True)


def _stats_kernel(patches_ref, w_ref, sum_ref, sumsq_ref):
    @pl.when(pl.program_id(1) == 0)
    def _():
        sum_ref[...] = jnp.zeros_like(sum_ref)
        sumsq_ref[...] = jnp.zeros_like(sumsq_ref)

    conv = jnp.dot(patches_ref[...], w_ref[...], preferred_element_type=jnp.float32)
    sum_ref[...] += jnp.sum(conv, axis=0, keepdims=True)
    sumsq_ref[...] += jnp.sum(conv * conv, axis=0, keepdims=True)


# ---------------------------------------------------------------------------
# Pass 2 kernels: fused BN affine + LeakyReLU(0.1).
# ---------------------------------------------------------------------------
def _affine_kernel(conv_ref, scale_ref, shift_ref, out_ref):
    # Pure elementwise: reads the conv tile stored by pass 1 (no second GEMM).
    y = conv_ref[...].astype(jnp.float32) * scale_ref[...] + shift_ref[...]
    out_ref[...] = jnp.maximum(y, LEAKY_SLOPE * y).astype(out_ref.dtype)


def _normalize_kernel(patches_ref, w_ref, scale_ref, shift_ref, out_ref):
    # Recompute path (K_p <= Cout_p, e.g. 1x1 convs): re-run the cheap GEMM.
    conv = jnp.dot(patches_ref[...], w_ref[...], preferred_element_type=jnp.float32)
    y = conv * scale_ref[...] + shift_ref[...]
    out_ref[...] = jnp.maximum(y, LEAKY_SLOPE * y).astype(out_ref.dtype)


# ---------------------------------------------------------------------------
# Glue
# ---------------------------------------------------------------------------
def _im2col_nchw(x, kh, kw, stride, padding):
    """NCHW input -> (N*Ho*Wo, Cin*kh*kw) patch matrix (Cin outer, kh, kw inner)."""
    n, c, h, w = x.shape
    xp = jnp.pad(x, ((0, 0), (0, 0), (padding, padding), (padding, padding)))
    ho = (h + 2 * padding - kh) // stride + 1
    wo = (w + 2 * padding - kw) // stride + 1
    pieces = []
    for i in range(kh):
        for j in range(kw):
            pieces.append(xp[:, :, i:i + stride * ho:stride, j:j + stride * wo:stride])
    p = jnp.stack(pieces, axis=2)                      # (N, C, kh*kw, Ho, Wo)
    p = p.transpose(0, 3, 4, 1, 2).reshape(n * ho * wo, c * kh * kw)
    return p, ho, wo


def dbl_forward(x, conv_w, conv_b, bn_gamma, bn_beta, *, stride, padding,
                tm=512, mxu_dtype=jnp.bfloat16, out_dtype=jnp.float32,
                out_layout="NCHW"):
    """x: NCHW f32. conv_w: (Cout, Cin, kh, kw). Train-mode BN (batch statistics)."""
    # NOTE: valid ONLY for train-mode BN -- the batch mean is subtracted right after the
    # conv, so the conv bias cancels exactly.  Do not reuse for eval-mode running stats.
    del conv_b

    n = x.shape[0]
    cout, cin, kh, kw = conv_w.shape

    patches, ho, wo = _im2col_nchw(x, kh, kw, stride, padding)
    m, k = patches.shape

    cout_p = _round_up(cout, LANE)                  # lane-dense output / MXU columns
    k_p = _round_up(k, LANE)                        # lane-dense contraction

    tm = max(SUBLANE, min(int(tm), _round_up((m + 1) // 2, SUBLANE)))
    tm = _round_up(tm, SUBLANE)
    m_p = _round_up(m, NSPLIT * tm)                 # even tile count -> 2-way core split
    n_tiles = m_p // tm
    half = n_tiles // NSPLIT

    # Zero-pad rows (M), contraction (K) and output channels; cast MXU operands.
    # Padded patch rows are all-zero -> contribute 0 to sum/sumsq -> stats stay exact.
    patches_p = jnp.pad(patches, ((0, m_p - m), (0, k_p - k))).astype(mxu_dtype)
    w2d = jnp.pad(conv_w.reshape(cout, cin * kh * kw).T,
                  ((0, k_p - k), (0, cout_p - cout))).astype(mxu_dtype)

    params1 = pltpu.CompilerParams(dimension_semantics=("parallel", "arbitrary"),
                                   vmem_limit_bytes=_VMEM_LIMIT)
    params2 = pltpu.CompilerParams(dimension_semantics=("parallel",),
                                   vmem_limit_bytes=_VMEM_LIMIT)

    # ---- Pass 1: batch statistics (+ conv tiles when the store path pays off) ----
    patch_spec1 = pl.BlockSpec((tm, k_p), lambda c, i: (c * half + i, 0))
    w_spec1 = _bcast_spec((k_p, cout_p), lambda c, i: (0, 0))
    stat_spec = pl.BlockSpec((8, cout_p), lambda c, i: (c, 0))      # resident per split
    stat_shape = jax.ShapeDtypeStruct((NSPLIT * 8, cout_p), jnp.float32)

    # Store the conv when re-reading it beats re-reading the (wider) patch matrix.
    store_conv = k_p > cout_p

    if store_conv:
        conv_spec1 = pl.BlockSpec((tm, cout_p), lambda c, i: (c * half + i, 0))
        conv_store, ch_sum_all, ch_sumsq_all = pl.pallas_call(
            _stats_store_kernel,
            out_shape=(jax.ShapeDtypeStruct((m_p, cout_p), mxu_dtype),
                       stat_shape, stat_shape),
            grid=(NSPLIT, half),
            in_specs=[patch_spec1, w_spec1],
            out_specs=(conv_spec1, stat_spec, stat_spec),
            compiler_params=params1,
        )(patches_p, w2d)
    else:
        conv_store = None
        ch_sum_all, ch_sumsq_all = pl.pallas_call(
            _stats_kernel,
            out_shape=(stat_shape, stat_shape),
            grid=(NSPLIT, half),
            in_specs=[patch_spec1, w_spec1],
            out_specs=(stat_spec, stat_spec),
            compiler_params=params1,
        )(patches_p, w2d)

    # ---- Tiny per-channel math in the glue: fold BN into scale/shift ----
    ch_sum = ch_sum_all.reshape(NSPLIT, 8, cout_p)[:, 0, :].sum(axis=0)
    ch_sumsq = ch_sumsq_all.reshape(NSPLIT, 8, cout_p)[:, 0, :].sum(axis=0)
    inv_m = 1.0 / float(m)                               # real M (padding contributes 0)
    mean = ch_sum * inv_m
    var = jnp.maximum(ch_sumsq * inv_m - mean * mean, 0.0)   # biased var, clamped >= 0
    inv_std = jax.lax.rsqrt(var + BN_EPS)
    gamma_p = jnp.pad(bn_gamma.astype(jnp.float32), (0, cout_p - cout))
    beta_p = jnp.pad(bn_beta.astype(jnp.float32), (0, cout_p - cout))
    scale = (gamma_p * inv_std).reshape(1, cout_p)
    shift = (beta_p - mean * gamma_p * inv_std).reshape(1, cout_p)

    # ---- Pass 2: BN affine + LeakyReLU (independent tiles -> "parallel") ----
    chan_spec = _bcast_spec((1, cout_p), lambda i: (0, 0))
    out_spec = pl.BlockSpec((tm, cout_p), lambda i: (i, 0))

    if store_conv:
        out = pl.pallas_call(
            _affine_kernel,
            out_shape=jax.ShapeDtypeStruct((m_p, cout_p), out_dtype),
            grid=(n_tiles,),
            in_specs=[pl.BlockSpec((tm, cout_p), lambda i: (i, 0)),
                      chan_spec, chan_spec],
            out_specs=out_spec,
            compiler_params=params2,
        )(conv_store, scale, shift)
    else:
        out = pl.pallas_call(
            _normalize_kernel,
            out_shape=jax.ShapeDtypeStruct((m_p, cout_p), out_dtype),
            grid=(n_tiles,),
            in_specs=[pl.BlockSpec((tm, k_p), lambda i: (i, 0)),
                      _bcast_spec((k_p, cout_p), lambda i: (0, 0)),
                      chan_spec, chan_spec],
            out_specs=out_spec,
            compiler_params=params2,
        )(patches_p, w2d, scale, shift)

    # Slice off row/channel padding. NHWC avoids the layout round-trip if the consumer
    # tolerates channels-last; default NCHW matches PyTorch.
    out = out[:m, :cout].reshape(n, ho, wo, cout)
    if out_layout == "NHWC":
        return out
    return out.transpose(0, 3, 1, 2)


# ---------------------------------------------------------------------------
# Pure-JAX reference matching PyTorch _DBL.forward in training mode
# ---------------------------------------------------------------------------
def _reference(x, conv_w, conv_b, bn_gamma, bn_beta, *, stride, padding):
    conv = jax.lax.conv_general_dilated(
        x, conv_w, window_strides=(stride, stride),
        padding=((padding, padding), (padding, padding)),
        dimension_numbers=("NCHW", "OIHW", "NCHW"))
    conv = conv + conv_b.reshape(1, -1, 1, 1)
    mean = jnp.mean(conv, axis=(0, 2, 3), keepdims=True)
    var = jnp.mean((conv - mean) ** 2, axis=(0, 2, 3), keepdims=True)  # biased
    y = (conv - mean) * jax.lax.rsqrt(var + BN_EPS)
    y = y * bn_gamma.reshape(1, -1, 1, 1) + bn_beta.reshape(1, -1, 1, 1)
    return jnp.where(y >= 0.0, y, LEAKY_SLOPE * y)


if __name__ == "__main__":
    key = jax.random.PRNGKey(0)
    k_x, k_w, k_b, k_g, k_bt = jax.random.split(key, 5)

    N, H, W = 2, 16, 16
    COUT, KS, PAD, STRIDE = 8, 3, 1, 1
    conv_b = jax.random.normal(k_b, (COUT,), dtype=jnp.float32) * 0.1
    bn_gamma = 1.0 + 0.1 * jax.random.normal(k_g, (COUT,), dtype=jnp.float32)
    bn_beta = 0.1 * jax.random.normal(k_bt, (COUT,), dtype=jnp.float32)

    # --- Config A: Cin=4 (K_p == Cout_p == 128) -> recompute path ---
    CIN = 4
    x = jax.random.normal(k_x, (N, CIN, H, W), dtype=jnp.float32)
    conv_w = jax.random.normal(k_w, (COUT, CIN, KS, KS), dtype=jnp.float32) * 0.1
    ref = _reference(x, conv_w, conv_b, bn_gamma, bn_beta, stride=STRIDE, padding=PAD)

    fwd_f32 = jax.jit(functools.partial(
        dbl_forward, stride=STRIDE, padding=PAD, mxu_dtype=jnp.float32))
    out = jax.block_until_ready(fwd_f32(x, conv_w, conv_b, bn_gamma, bn_beta))
    assert out.shape == (N, COUT, H, W), out.shape
    assert jnp.allclose(out, ref, atol=2e-4, rtol=2e-4), \
        float(jnp.max(jnp.abs(out - ref)))

    fwd_bf16 = jax.jit(functools.partial(dbl_forward, stride=STRIDE, padding=PAD))
    out_b = jax.block_until_ready(fwd_bf16(x, conv_w, conv_b, bn_gamma, bn_beta))
    assert out_b.shape == (N, COUT, H, W), out_b.shape
    assert jnp.allclose(out_b, ref, atol=1e-1, rtol=1e-1), \
        float(jnp.max(jnp.abs(out_b - ref)))

    # --- Config B: Cin=16 (K_p=256 > Cout_p=128) -> conv-store path (elementwise pass 2) ---
    CIN2 = 16
    x2 = jax.random.normal(k_x, (N, CIN2, H, W), dtype=jnp.float32)
    conv_w2 = jax.random.normal(k_w, (COUT, CIN2, KS, KS), dtype=jnp.float32) * 0.1
    ref2 = _reference(x2, conv_w2, conv_b, bn_gamma, bn_beta, stride=STRIDE, padding=PAD)

    out2 = jax.block_until_ready(jax.jit(functools.partial(
        dbl_forward, stride=STRIDE, padding=PAD, mxu_dtype=jnp.float32))(
            x2, conv_w2, conv_b, bn_gamma, bn_beta))
    assert out2.shape == (N, COUT, H, W), out2.shape
    assert jnp.allclose(out2, ref2, atol=2e-4, rtol=2e-4), \
        float(jnp.max(jnp.abs(out2 - ref2)))

    out2_b = jax.block_until_ready(jax.jit(functools.partial(
        dbl_forward, stride=STRIDE, padding=PAD))(
            x2, conv_w2, conv_b, bn_gamma, bn_beta))
    assert jnp.allclose(out2_b, ref2, atol=1e-1, rtol=1e-1), \
        float(jnp.max(jnp.abs(out2_b - ref2)))

    print("KERNEL_OK")
</pallas_src>

<mosaic_0001>
module attributes {stable_mosaic.version = 11 : i64} {
  func.func @_k(%arg0: i32, %arg1: memref<8x128xf32, #tpu.memory_space<vmem>>, %arg2: memref<8x128xf32, #tpu.memory_space<vmem>>) attributes {dimension_semantics = [#tpu.dimension_semantics<arbitrary>], iteration_bounds = array<i64: 2>, scalar_prefetch = 0 : i64, scratch_operands = 0 : i64, tpu.core_type = #tpu.core_type<tc>, window_params = [{pipeline_mode = #tpu.pipeline_mode<synchronous>, transform_indices = @transform_0, window_bounds = array<i64: 8, 128>}, {transform_indices = @transform_1, window_bounds = array<i64: 8, 128>}]} {
    %c0 = arith.constant 0 : index
    %c0_0 = arith.constant 0 : index
    %0 = vector.load %arg1[%c0, %c0_0] : memref<8x128xf32, #tpu.memory_space<vmem>>, vector<8x128xf32>
    %cst = arith.constant 1.000000e+00 : f32
    %1 = vector.broadcast %cst : f32 to vector<8x128xf32>
    %2 = arith.addf %0, %1 : vector<8x128xf32>
    %c0_1 = arith.constant 0 : index
    %c0_2 = arith.constant 0 : index
    %3 = vector.load %arg2[%c0_1, %c0_2] : memref<8x128xf32, #tpu.memory_space<vmem>>, vector<8x128xf32>
    tpu.vector_store %arg2[%c0_1, %c0_2], %2 {strides = array<i32>} : memref<8x128xf32, #tpu.memory_space<vmem>>, vector<8x128xf32>,
    return
  }
  func.func @transform_0(%arg0: i32) -> (i32, i32) {
    %c0_i32 = arith.constant 0 : i32
    %c0_i32_0 = arith.constant 0 : i32
    %c0_i32_1 = arith.constant 0 : i32
    return %c0_i32, %c0_i32_0 : i32, i32
  }
  func.func @transform_1(%arg0: i32) -> (i32, i32) {
    %c0_i32 = arith.constant 0 : i32
    %c0_i32_0 = arith.constant 0 : i32
    return %arg0, %c0_i32 : i32, i32
  }
}

module attributes {stable_mosaic.version = 11 : i64} {
  func.func @_stats_kernel(%arg0: i32, %arg1: i32, %arg2: memref<256x128xf32, #tpu.memory_space<vmem>>, %arg3: memref<128x128xf32, #tpu.memory_space<vmem>>, %arg4: memref<8x128xf32, #tpu.memory_space<vmem>>, %arg5: memref<8x128xf32, #tpu.memory_space<vmem>>) attributes {dimension_semantics = [#tpu.dimension_semantics<parallel>, #tpu.dimension_semantics<arbitrary>], iteration_bounds = array<i64: 2, 1>, scalar_prefetch = 0 : i64, scratch_operands = 0 : i64, tpu.core_type = #tpu.core_type<tc>, window_params = [{transform_indices = @transform_0, window_bounds = array<i64: 256, 128>}, {pipeline_mode = #tpu.pipeline_mode<synchronous>, transform_indices = @transform_1, window_bounds = array<i64: 128, 128>}, {transform_indices = @transform_2, window_bounds = array<i64: 8, 128>}, {transform_indices = @transform_3, window_bounds = array<i64: 8, 128>}]} {
    %c0_i32 = arith.constant 0 : i32
    %0 = arith.cmpi eq, %arg1, %c0_i32 : i32
    %1 = arith.extui %0 : i1 to i32
    %c0_i32_0 = arith.constant 0 : i32
    %2 = arith.cmpi ne, %1, %c0_i32_0 : i32
    scf.if %2 {
      %cst_14 = arith.constant 0.000000e+00 : f32
      %19 = vector.broadcast %cst_14 : f32 to vector<8x128xf32>
      %c0_15 = arith.constant 0 : index
      %c0_16 = arith.constant 0 : index
      %20 = vector.load %arg4[%c0_15, %c0_16] : memref<8x128xf32, #tpu.memory_space<vmem>>, vector<8x128xf32>
      tpu.vector_store %arg4[%c0_15, %c0_16], %19 {strides = array<i32>} : memref<8x128xf32, #tpu.memory_space<vmem>>, vector<8x128xf32>,
      %cst_17 = arith.constant 0.000000e+00 : f32
      %21 = vector.broadcast %cst_17 : f32 to vector<8x128xf32>
      %c0_18 = arith.constant 0 : index
      %c0_19 = arith.constant 0 : index
      %22 = vector.load %arg5[%c0_18, %c0_19] : memref<8x128xf32, #tpu.memory_space<vmem>>, vector<8x128xf32>
      tpu.vector_store %arg5[%c0_18, %c0_19], %21 {strides = array<i32>} : memref<8x128xf32, #tpu.memory_space<vmem>>, vector<8x128xf32>,
    } else {
    }
    %c0 = arith.constant 0 : index
    %c0_1 = arith.constant 0 : index
    %3 = vector.load %arg2[%c0, %c0_1] : memref<256x128xf32, #tpu.memory_space<vmem>>, vector<256x128xf32>
    %c0_2 = arith.constant 0 : index
    %c0_3 = arith.constant 0 : index
    %4 = vector.load %arg3[%c0_2, %c0_3] : memref<128x128xf32, #tpu.memory_space<vmem>>, vector<128x128xf32>
    %cst = arith.constant dense<0.000000e+00> : vector<256x128xf32>
    %5 = tpu.matmul %3, %4, %cst {dimension_numbers = #tpu.dot_dimension_numbers<[1], [0], [0], [1], [0, 0, 1, 1], [], []>} : vector<256x128xf32>, vector<128x128xf32>, vector<256x128xf32> -> vector<256x128xf32>
    %c0_4 = arith.constant 0 : index
    %c0_5 = arith.constant 0 : index
    %6 = vector.load %arg4[%c0_4, %c0_5] : memref<8x128xf32, #tpu.memory_space<vmem>>, vector<8x128xf32>
    %cst_6 = arith.constant dense<0.000000e+00> : vector<128xf32>
    %7 = vector.multi_reduction <add>, %5, %cst_6 [0] : vector<256x128xf32> to vector<128xf32>
    %8 = vector.shape_cast %7 : vector<128xf32> to vector<1x128xf32>
    %9 = vector.broadcast %8 : vector<1x128xf32> to vector<8x128xf32>
    %10 = arith.addf %6, %9 : vector<8x128xf32>
    %c0_7 = arith.constant 0 : index
    %c0_8 = arith.constant 0 : index
    %11 = vector.load %arg4[%c0_7, %c0_8] : memref<8x128xf32, #tpu.memory_space<vmem>>, vector<8x128xf32>
    tpu.vector_store %arg4[%c0_7, %c0_8], %10 {strides = array<i32>} : memref<8x128xf32, #tpu.memory_space<vmem>>, vector<8x128xf32>,
    %c0_9 = arith.constant 0 : index
    %c0_10 = arith.constant 0 : index
    %12 = vector.load %arg5[%c0_9, %c0_10] : memref<8x128xf32, #tpu.memory_space<vmem>>, vector<8x128xf32>
    %13 = arith.mulf %5, %5 : vector<256x128xf32>
    %cst_11 = arith.constant dense<0.000000e+00> : vector<128xf32>
    %14 = vector.multi_reduction <add>, %13, %cst_11 [0] : vector<256x128xf32> to vector<128xf32>
    %15 = vector.shape_cast %14 : vector<128xf32> to vector<1x128xf32>
    %16 = vector.broadcast %15 : vector<1x128xf32> to vector<8x128xf32>
    %17 = arith.addf %12, %16 : vector<8x128xf32>
    %c0_12 = arith.constant 0 : index
    %c0_13 = arith.constant 0 : index
    %18 = vector.load %arg5[%c0_12, %c0_13] : memref<8x128xf32, #tpu.memory_space<vmem>>, vector<8x128xf32>
    tpu.vector_store %arg5[%c0_12, %c0_13], %17 {strides = array<i32>} : memref<8x128xf32, #tpu.memory_space<vmem>>, vector<8x128xf32>,
    return
  }
  func.func @transform_0(%arg0: i32, %arg1: i32) -> (i32, i32) {
    %c1_i32 = arith.constant 1 : i32
    %0 = arith.muli %arg0, %c1_i32 : i32
    %1 = arith.addi %0, %arg1 : i32
    %c0_i32 = arith.constant 0 : i32
    %c0_i32_0 = arith.constant 0 : i32
    return %1, %c0_i32 : i32, i32
  }
  func.func @transform_1(%arg0: i32, %arg1: i32) -> (i32, i32) {
    %c0_i32 = arith.constant 0 : i32
    %c0_i32_0 = arith.constant 0 : i32
    %c0_i32_1 = arith.constant 0 : i32
    return %c0_i32, %c0_i32_0 : i32, i32
  }
  func.func @transform_2(%arg0: i32, %arg1: i32) -> (i32, i32) {
    %c0_i32 = arith.constant 0 : i32
    %c0_i32_0 = arith.constant 0 : i32
    return %arg0, %c0_i32 : i32, i32
  }
  func.func @transform_3(%arg0: i32, %arg1: i32) -> (i32, i32) {
    %c0_i32 = arith.constant 0 : i32
    %c0_i32_0 = arith.constant 0 : i32
    return %arg0, %c0_i32 : i32, i32
  }
}

module attributes {stable_mosaic.version = 11 : i64} {
  func.func @_normalize_kernel(%arg0: i32, %arg1: memref<256x128xf32, #tpu.memory_space<vmem>>, %arg2: memref<128x128xf32, #tpu.memory_space<vmem>>, %arg3: memref<1x128xf32, #tpu.memory_space<vmem>>, %arg4: memref<1x128xf32, #tpu.memory_space<vmem>>, %arg5: memref<256x128xf32, #tpu.memory_space<vmem>>) attributes {dimension_semantics = [#tpu.dimension_semantics<parallel>], iteration_bounds = array<i64: 2>, scalar_prefetch = 0 : i64, scratch_operands = 0 : i64, tpu.core_type = #tpu.core_type<tc>, window_params = [{transform_indices = @transform_0, window_bounds = array<i64: 256, 128>}, {pipeline_mode = #tpu.pipeline_mode<synchronous>, transform_indices = @transform_1, window_bounds = array<i64: 128, 128>}, {pipeline_mode = #tpu.pipeline_mode<synchronous>, transform_indices = @transform_2, window_bounds = array<i64: 1, 128>}, {pipeline_mode = #tpu.pipeline_mode<synchronous>, transform_indices = @transform_3, window_bounds = array<i64: 1, 128>}, {transform_indices = @transform_4, window_bounds = array<i64: 256, 128>}]} {
    %c0 = arith.constant 0 : index
    %c0_0 = arith.constant 0 : index
    %0 = vector.load %arg1[%c0, %c0_0] : memref<256x128xf32, #tpu.memory_space<vmem>>, vector<256x128xf32>
    %c0_1 = arith.constant 0 : index
    %c0_2 = arith.constant 0 : index
    %1 = vector.load %arg2[%c0_1, %c0_2] : memref<128x128xf32, #tpu.memory_space<vmem>>, vector<128x128xf32>
    %cst = arith.constant dense<0.000000e+00> : vector<256x128xf32>
    %2 = tpu.matmul %0, %1, %cst {dimension_numbers = #tpu.dot_dimension_numbers<[1], [0], [0], [1], [0, 0, 1, 1], [], []>} : vector<256x128xf32>, vector<128x128xf32>, vector<256x128xf32> -> vector<256x128xf32>
    %c0_3 = arith.constant 0 : index
    %c0_4 = arith.constant 0 : index
    %3 = vector.load %arg3[%c0_3, %c0_4] : memref<1x128xf32, #tpu.memory_space<vmem>>, vector<1x128xf32>
    %4 = vector.broadcast %3 : vector<1x128xf32> to vector<256x128xf32>
    %5 = arith.mulf %2, %4 : vector<256x128xf32>
    %c0_5 = arith.constant 0 : index
    %c0_6 = arith.constant 0 : index
    %6 = vector.load %arg4[%c0_5, %c0_6] : memref<1x128xf32, #tpu.memory_space<vmem>>, vector<1x128xf32>
    %7 = vector.broadcast %6 : vector<1x128xf32> to vector<256x128xf32>
    %8 = arith.addf %5, %7 : vector<256x128xf32>
    %cst_7 = arith.constant 1.000000e-01 : f32
    %9 = vector.broadcast %cst_7 : f32 to vector<256x128xf32>
    %10 = arith.mulf %9, %8 : vector<256x128xf32>
    %11 = arith.maximumf %8, %10 : vector<256x128xf32>
    %c0_8 = arith.constant 0 : index
    %c0_9 = arith.constant 0 : index
    %12 = vector.load %arg5[%c0_8, %c0_9] : memref<256x128xf32, #tpu.memory_space<vmem>>, vector<256x128xf32>
    tpu.vector_store %arg5[%c0_8, %c0_9], %11 {strides = array<i32>} : memref<256x128xf32, #tpu.memory_space<vmem>>, vector<256x128xf32>,
    return
  }
  func.func @transform_0(%arg0: i32) -> (i32, i32) {
    %c0_i32 = arith.constant 0 : i32
    %c0_i32_0 = arith.constant 0 : i32
    return %arg0, %c0_i32 : i32, i32
  }
  func.func @transform_1(%arg0: i32) -> (i32, i32) {
    %c0_i32 = arith.constant 0 : i32
    %c0_i32_0 = arith.constant 0 : i32
    %c0_i32_1 = arith.constant 0 : i32
    return %c0_i32, %c0_i32_0 : i32, i32
  }
  func.func @transform_2(%arg0: i32) -> (i32, i32) {
    %c0_i32 = arith.constant 0 : i32
    %c0_i32_0 = arith.constant 0 : i32
    %c0_i32_1 = arith.constant 0 : i32
    return %c0_i32, %c0_i32_0 : i32, i32
  }
  func.func @transform_3(%arg0: i32) -> (i32, i32) {
    %c0_i32 = arith.constant 0 : i32
    %c0_i32_0 = arith.constant 0 : i32
    %c0_i32_1 = arith.constant 0 : i32
    return %c0_i32, %c0_i32_0 : i32, i32
  }
  func.func @transform_4(%arg0: i32) -> (i32, i32) {
    %c0_i32 = arith.constant 0 : i32
    %c0_i32_0 = arith.constant 0 : i32
    return %arg0, %c0_i32 : i32, i32
  }
}

</mosaic_0001>

<llo_original>
// kernel: tpu_custom_call.1
$region0: #{tpu_custom_call.1}
  #allocation0 [shape = 'u32[]', space=smem, size = 0x4, offset = 0x4, fixed_abs, tag = 'smem constant byte address 0x4 - core index']
  #allocation1 [shape = 'u32[72,128]{1,0:T(1,128)}', space=vmem, size = 0x9000, scoped, tag = 'internal scratch']
  %s0 = inlined_call_operand.hbm [shape: f32[8,128], index: 0, kind: input, shape index: {}]
  %s1 = inlined_call_operand.hbm [shape: f32[16,128], index: 1, kind: output, shape index: {}]
  %s2 = sld [smem:[#allocation0]]
  $region41: #{tpu_custom_call.1} parent=0
    _
  %s4 = ssub.s32 1, %s2
  %s5 = scalar_select 0, %s4, %s2
  $region1: #{tpu_custom_call.1} parent=0
    #allocation2 [shape = 'u8[4096]{0}', space=vmem, size = 0x1000, scoped, tag = 'input window, operand 0, single buffered']
    #allocation3 [shape = 's32[2]{0}', space=sflag, size = 0x8, scoped, tag = 'scoped memory for tpu_custom_call.1']
    #allocation4 [shape = 's32[2]{0}', space=sflag, size = 0x8, scoped, tag = 'scoped memory for tpu_custom_call.1']
    #allocation5 [shape = 'u8[8192]{0}', space=vmem, size = 0x2000, scoped, tag = 'output window, operand 0']
    %6 = vsyncpa [#allocation3], 0
    %7 = vsyncpa [#allocation4], 0
    %s8 = scalar_lea.sflag [#allocation4], 1
    %9 = vsyncpa %s8, 0
    loop: start=0, step=1, limit=4
    $region2: #{tpu_custom_call.1} parent=1 // loop_pre_header
      _
    $region3: #{tpu_custom_call.1} parent=1 // loop_header
      %s11 = sphi 0, %s15
      %p12 = scmp.ge.s32.totalorder %s11, 4
      %s19 = sphi 0, %s19
      %s21 = sphi 0, %s19
      %s22 = sphi 0, %s21
      %s36 = sphi 0, %s22
      %s42 = sphi 0, %s44
      %s45 = sphi 0, %s42
      %s46 = sphi 0, %s45
      %s62 = sphi 0, %s46
    $region4: #{tpu_custom_call.1} parent=1 // loop_header_branch
      %14 = sbr.rel (%p12) target = $region8
    $region5: #{tpu_custom_call.1} parent=1 // loop_body
      %s16 = ssub.s32 %s11, 1
      %s17 = ssub.s32 %s11, 2
      %s18 = sadd.s32 %s11, 1
      %s20 = sadd.s32 %s19, 1
      %p23 = scmp.eq.s32.totalorder %s11, 1
      %p24 = scmp.ne.s32.totalorder %s19, %s21
      %p25 = scmp.eq.s32.totalorder %s11, 0
      %p26 = por %p24, %p25
      %p27 = scmp.ne.s32.totalorder %s19, %s21
      %p28 = scmp.eq.s32.totalorder %s16, 1
      %p29 = por %p27, %p28
      %p30 = scmp.ne.s32.totalorder %s21, %s22
      %p31 = scmp.eq.s32.totalorder %s16, 0
      %p32 = por %p30, %p31
      %p33 = scmp.ne.s32.totalorder %s21, %s22
      %p34 = scmp.eq.s32.totalorder %s17, 1
      %p35 = por %p33, %p34
      %p37 = scmp.ne.s32.totalorder %s22, %s36
      %p38 = scmp.eq.s32.totalorder %s17, 0
      %p39 = por %p37, %p38
      %s40 = ssub.s32 %s11, %s18
      %p41 = scmp.eq.s32.totalorder %s40, 0
      %s43 = sadd.s32 %s42, 1
      %s44 = scalar_select %p41, %s42, %s43
      %p47 = pneg %p41
      %p48 = scmp.eq.s32.totalorder %s11, 1
      %p49 = por %p47, %p48
      %p50 = scmp.ne.s32.totalorder %s42, %s45
      %p51 = scmp.eq.s32.totalorder %s11, 0
      %p52 = por %p50, %p51
      %p53 = scmp.ne.s32.totalorder %s42, %s45
      %p54 = scmp.eq.s32.totalorder %s16, 1
      %p55 = por %p53, %p54
      %p56 = scmp.ne.s32.totalorder %s45, %s46
      %p57 = scmp.eq.s32.totalorder %s16, 0
      %p58 = por %p56, %p57
      %p59 = scmp.ne.s32.totalorder %s45, %s46
      %p60 = scmp.eq.s32.totalorder %s17, 1
      %p61 = por %p59, %p60
      %p63 = scmp.ne.s32.totalorder %s46, %s62
      %p64 = scmp.eq.s32.totalorder %s17, 0
      %p65 = por %p63, %p64
      %p66 = scmp.le.s32.totalorder 1, %s11
      %p67 = scmp.lt.s32.totalorder %s11, 3
      %p68 = pnand %p66, %p67
      %p69 = pneg %p68
      // Predicated region
      $region9: #{tpu_custom_call.1} parent=5 // pred_check
        _
      $region10: #{tpu_custom_call.1} parent=5 // pred_check_branch
        %71 = sbr.rel (%p68) target = $region12
      $region11: #{tpu_custom_call.1} parent=5 // pred_region
        %s72 = ssub.s32 %s11, 1
        // Predicated region
        $region13: #{tpu_custom_call.1} parent=11 // pred_check
          %p73 = pneg %p32
        $region14: #{tpu_custom_call.1} parent=11 // pred_check_branch
          %75 = sbr.rel (%p73) target = $region16
        $region15: #{tpu_custom_call.1} parent=11 // pred_region
          %77 = vsyncadd [#allocation3], 0
          %s79 = sshll.u32 %s0, 4
          %s80 = int_to_ptr.hbm [resolvable:$true] %s79
          %s81 = sshll.u32 [#allocation2], 4
          %s82 = int_to_ptr.vmem [resolvable:$true] %s81
          %84 = dma.hbm_to_vmem [thread:$0]  %s80, 128, %s82, [#allocation3]
        $region16: #{tpu_custom_call.1} parent=11 // pred_fallthru
          _
      $region12: #{tpu_custom_call.1} parent=5 // pred_fallthru
        _
      %p85 = scmp.lt.s32.totalorder %s11, 2
      // Predicated region
      $region17: #{tpu_custom_call.1} parent=5 // pred_check
        %p86 = pneg %p85
      $region18: #{tpu_custom_call.1} parent=5 // pred_check_branch
        %88 = sbr.rel (%p86) target = $region20
      $region19: #{tpu_custom_call.1} parent=5 // pred_region
        _
      $region20: #{tpu_custom_call.1} parent=5 // pred_fallthru
        _
      %p89 = scmp.le.s32.totalorder 1, %s11
      %p90 = scmp.lt.s32.totalorder %s11, 3
      %p91 = pnand %p89, %p90
      %p92 = pneg %p91
      // Predicated region
      $region21: #{tpu_custom_call.1} parent=5 // pred_check
        _
      $region22: #{tpu_custom_call.1} parent=5 // pred_check_branch
        %94 = sbr.rel (%p91) target = $region24
      $region23: #{tpu_custom_call.1} parent=5 // pred_region
        %s95 = ssub.s32 %s11, 1
        // Predicated region
        $region25: #{tpu_custom_call.1} parent=23 // pred_check
          %p96 = pneg %p32
        $region26: #{tpu_custom_call.1} parent=23 // pred_check_branch
          %98 = sbr.rel (%p96) target = $region28
        $region27: #{tpu_custom_call.1} parent=23 // pred_region
          %100 = dma.done [#allocation3], 128
        $region28: #{tpu_custom_call.1} parent=23 // pred_fallthru
          _
        %p101 = pneg %p32
        %p102 = pneg %p29
        %p103 = pneg %p58
        %p104 = pneg %p55
        %s105 = sand.u32 %s45, 1
        %s106 = scalar_lea.sflag [#allocation4], %s105
        %s107 = sand.u32 %s45, 1
        %s108 = smul.addr %s107, 8
        %s109 = scalar_lea.vmem [#allocation5], %s108
        %v110 = vld [vmem:[#allocation2] sm:$0xff]
        %v111 = vadd.f32 %v110, 1.0
        %112 = vst [vmem:[%s109] sm:$0xff] %v111
        %s113 = sand.u32 %s45, 1
        %s114 = scalar_lea.sflag [#allocation4], %s113
        %s115 = sand.u32 %s45, 1
        %s116 = smul.addr %s115, 8
        %s117 = scalar_lea.vmem [#allocation5], %s116
        // Predicated region
        $region29: #{tpu_custom_call.1} parent=23 // pred_check
          %p118 = pneg %p55
        $region30: #{tpu_custom_call.1} parent=23 // pred_check_branch
          %120 = sbr.rel (%p118) target = $region32
        $region31: #{tpu_custom_call.1} parent=23 // pred_region
          %122 = vsyncadd %s114, 0
          %s123 = smul.addr %s16, 8
          %s124 = scalar_lea.hbm %s1, %s123
          %s126 = sshll.u32 %s117, 4
          %s127 = int_to_ptr.vmem [resolvable:$true] %s126
          %s128 = sshll.u32 %s124, 4
          %s129 = int_to_ptr.hbm [resolvable:$true] %s128
          %131 = dma.vmem_to_hbm [thread:$0]  %s127, 128, %s129, %s114
        $region32: #{tpu_custom_call.1} parent=23 // pred_fallthru
          _
      $region24: #{tpu_custom_call.1} parent=5 // pred_fallthru
        _
      %p132 = scmp.le.s32.totalorder 2, %s11
      // Predicated region
      $region33: #{tpu_custom_call.1} parent=5 // pred_check
        %p133 = pneg %p132
      $region34: #{tpu_custom_call.1} parent=5 // pred_check_branch
        %135 = sbr.rel (%p133) target = $region36
      $region35: #{tpu_custom_call.1} parent=5 // pred_region
        %s136 = ssub.s32 %s11, 2
        // Predicated region
        $region37: #{tpu_custom_call.1} parent=35 // pred_check
          %p137 = pneg %p61
        $region38: #{tpu_custom_call.1} parent=35 // pred_check_branch
          %139 = sbr.rel (%p137) target = $region40
        $region39: #{tpu_custom_call.1} parent=35 // pred_region
          %s140 = sand.u32 %s46, 1
          %s141 = scalar_lea.sflag [#allocation4], %s140
          %s142 = sand.u32 %s46, 1
          %s143 = smul.addr %s142, 8
          %s144 = scalar_lea.vmem [#allocation5], %s143
          %146 = dma.done %s141, 128
        $region40: #{tpu_custom_call.1} parent=35 // pred_fallthru
          _
      $region36: #{tpu_custom_call.1} parent=5 // pred_fallthru
        _
    $region6: #{tpu_custom_call.1} parent=1 // loop_footer
      %s15 = sadd.s32 1, %s11
    $region7: #{tpu_custom_call.1} parent=1 // loop_footer_branch
      %10 = sbr.rel target = $region3
    $region8: #{tpu_custom_call.1} parent=1 // loop_exit
      _
    %147 = vsyncpa [#allocation3], 1
    %s148 = scalar_lea.sflag [#allocation3], 1
    %149 = vsyncpa %s148, 1
    %150 = vsyncpa [#allocation4], 1
    %s151 = scalar_lea.sflag [#allocation4], 1
    %152 = vsyncpa %s151, 1

// kernel: dbl_forward.2
$region0: #{dbl_forward.2}
  #allocation0 [shape = 'u32[]', space=smem, size = 0x4, offset = 0x4, fixed_abs, tag = 'smem constant byte address 0x4 - core index']
  #allocation1 [shape = 'u32[72,128]{1,0:T(1,128)}', space=vmem, size = 0x9000, scoped, tag = 'internal scratch']
  %s0 = inlined_call_operand.vmem [shape: f32[512,128], index: 0, kind: input, shape index: {}]
  %s1 = inlined_call_operand.vmem [shape: f32[128,128], index: 1, kind: input, shape index: {}]
  %s2 = inlined_call_operand.vmem [shape: f32[16,128], index: 2, kind: output, shape index: {0}]
  %s3 = inlined_call_operand.vmem [shape: f32[16,128], index: 3, kind: output, shape index: {1}]
  %4 = xla_tuple %s2, %s3
  %s5 = sld [smem:[#allocation0]]
  $region53: #{dbl_forward.2} parent=0
    _
  %s7 = ssub.s32 1, %s5
  %s8 = scalar_select 0, %s7, %s5
  loop: start=0, step=1, limit=4
  $region2: #{dbl_forward.2} parent=0 // loop_pre_header
    _
  $region3: #{dbl_forward.2} parent=0 // loop_header
    %s10 = sphi 0, %s14
    %p11 = scmp.ge.s32.totalorder %s10, 4
    %s17 = sphi 0, %s29
    %s18 = sphi 0, %s25
    %s19 = sphi 0, %s17
    %s20 = sphi 0, %s18
    %s21 = sphi 0, %s19
    %s22 = sphi 0, %s20
    %s34 = sphi 0, %s36
    %s37 = sphi 0, %s34
    %s38 = sphi 0, %s37
    %s54 = sphi 0, %s38
    %s58 = sphi 0, %s58
    %s60 = sphi 0, %s58
    %s61 = sphi 0, %s60
    %s75 = sphi 0, %s61
    %s81 = sphi 0, %s83
    %s84 = sphi 0, %s81
    %s85 = sphi 0, %s84
    %s101 = sphi 0, %s85
    %s107 = sphi 0, %s109
    %s110 = sphi 0, %s107
    %s111 = sphi 0, %s110
    %s127 = sphi 0, %s111
  $region4: #{dbl_forward.2} parent=0 // loop_header_branch
    %13 = sbr.rel (%p11) target = $region8
  $region5: #{dbl_forward.2} parent=0 // loop_body
    %s15 = ssub.s32 %s10, 1
    %s16 = ssub.s32 %s10, 2
    %s23 = sadd.s32 1, %s18
    %p24 = scmp.ge.s32.totalorder %s23, 1
    %s25 = scalar_select %p24, 0, %s23
    %s26 = sadd.s32 1, %s17
    %s27 = scalar_select %p24, %s26, %s17
    %p28 = scmp.ge.s32.totalorder %s27, 2
    %s29 = scalar_select %p28, 0, %s27
    %s30 = sadd.s32 %s17, %s18
    %s31 = sadd.s32 %s29, %s25
    %s32 = ssub.s32 %s30, %s31
    %p33 = scmp.eq.s32.totalorder %s32, 0
    %s35 = sadd.s32 %s34, 1
    %s36 = scalar_select %p33, %s34, %s35
    %p39 = pneg %p33
    %p40 = scmp.eq.s32.totalorder %s10, 1
    %p41 = por %p39, %p40
    %p42 = scmp.ne.s32.totalorder %s34, %s37
    %p43 = scmp.eq.s32.totalorder %s10, 0
    %p44 = por %p42, %p43
    %p45 = scmp.ne.s32.totalorder %s34, %s37
    %p46 = scmp.eq.s32.totalorder %s15, 1
    %p47 = por %p45, %p46
    %p48 = scmp.ne.s32.totalorder %s37, %s38
    %p49 = scmp.eq.s32.totalorder %s15, 0
    %p50 = por %p48, %p49
    %p51 = scmp.ne.s32.totalorder %s37, %s38
    %p52 = scmp.eq.s32.totalorder %s16, 1
    %p53 = por %p51, %p52
    %p55 = scmp.ne.s32.totalorder %s38, %s54
    %p56 = scmp.eq.s32.totalorder %s16, 0
    %p57 = por %p55, %p56
    %s59 = sadd.s32 %s58, 1
    %p62 = scmp.eq.s32.totalorder %s10, 1
    %p63 = scmp.ne.s32.totalorder %s58, %s60
    %p64 = scmp.eq.s32.totalorder %s10, 0
    %p65 = por %p63, %p64
    %p66 = scmp.ne.s32.totalorder %s58, %s60
    %p67 = scmp.eq.s32.totalorder %s15, 1
    %p68 = por %p66, %p67
    %p69 = scmp.ne.s32.totalorder %s60, %s61
    %p70 = scmp.eq.s32.totalorder %s15, 0
    %p71 = por %p69, %p70
    %p72 = scmp.ne.s32.totalorder %s60, %s61
    %p73 = scmp.eq.s32.totalorder %s16, 1
    %p74 = por %p72, %p73
    %p76 = scmp.ne.s32.totalorder %s61, %s75
    %p77 = scmp.eq.s32.totalorder %s16, 0
    %p78 = por %p76, %p77
    %s79 = ssub.s32 %s17, %s29
    %p80 = scmp.eq.s32.totalorder %s79, 0
    %s82 = sadd.s32 %s81, 1
    %s83 = scalar_select %p80, %s81, %s82
    %p86 = pneg %p80
    %p87 = scmp.eq.s32.totalorder %s10, 1
    %p88 = por %p86, %p87
    %p89 = scmp.ne.s32.totalorder %s81, %s84
    %p90 = scmp.eq.s32.totalorder %s10, 0
    %p91 = por %p89, %p90
    %p92 = scmp.ne.s32.totalorder %s81, %s84
    %p93 = scmp.eq.s32.totalorder %s15, 1
    %p94 = por %p92, %p93
    %p95 = scmp.ne.s32.totalorder %s84, %s85
    %p96 = scmp.eq.s32.totalorder %s15, 0
    %p97 = por %p95, %p96
    %p98 = scmp.ne.s32.totalorder %s84, %s85
    %p99 = scmp.eq.s32.totalorder %s16, 1
    %p100 = por %p98, %p99
    %p102 = scmp.ne.s32.totalorder %s85, %s101
    %p103 = scmp.eq.s32.totalorder %s16, 0
    %p104 = por %p102, %p103
    %s105 = ssub.s32 %s17, %s29
    %p106 = scmp.eq.s32.totalorder %s105, 0
    %s108 = sadd.s32 %s107, 1
    %s109 = scalar_select %p106, %s107, %s108
    %p112 = pneg %p106
    %p113 = scmp.eq.s32.totalorder %s10, 1
    %p114 = por %p112, %p113
    %p115 = scmp.ne.s32.totalorder %s107, %s110
    %p116 = scmp.eq.s32.totalorder %s10, 0
    %p117 = por %p115, %p116
    %p118 = scmp.ne.s32.totalorder %s107, %s110
    %p119 = scmp.eq.s32.totalorder %s15, 1
    %p120 = por %p118, %p119
    %p121 = scmp.ne.s32.totalorder %s110, %s111
    %p122 = scmp.eq.s32.totalorder %s15, 0
    %p123 = por %p121, %p122
    %p124 = scmp.ne.s32.totalorder %s110, %s111
    %p125 = scmp.eq.s32.totalorder %s16, 1
    %p126 = por %p124, %p125
    %p128 = scmp.ne.s32.totalorder %s111, %s127
    %p129 = scmp.eq.s32.totalorder %s16, 0
    %p130 = por %p128, %p129
    %p131 = scmp.le.s32.totalorder 1, %s10
    %p132 = scmp.lt.s32.totalorder %s10, 3
    %p133 = pnand %p131, %p132
    %p134 = pneg %p133
    // Predicated region
    $region9: #{dbl_forward.2} parent=5 // pred_check
      _
    $region10: #{dbl_forward.2} parent=5 // pred_check_branch
      %136 = sbr.rel (%p133) target = $region12
    $region11: #{dbl_forward.2} parent=5 // pred_region
      %s137 = ssub.s32 %s10, 1
      // Predicated region
      $region13: #{dbl_forward.2} parent=11 // pred_check
        %p138 = pneg %p71
      $region14: #{dbl_forward.2} parent=11 // pred_check_branch
        %140 = sbr.rel (%p138) target = $region16
      $region15: #{dbl_forward.2} parent=11 // pred_region
        _
      $region16: #{dbl_forward.2} parent=11 // pred_fallthru
        _
    $region12: #{dbl_forward.2} parent=5 // pred_fallthru
      _
    %p141 = scmp.lt.s32.totalorder %s10, 2
    // Predicated region
    $region17: #{dbl_forward.2} parent=5 // pred_check
      %p142 = pneg %p141
    $region18: #{dbl_forward.2} parent=5 // pred_check_branch
      %144 = sbr.rel (%p142) target = $region20
    $region19: #{dbl_forward.2} parent=5 // pred_region
      // Predicated region
      $region21: #{dbl_forward.2} parent=19 // pred_check
        %p145 = pneg %p44
      $region22: #{dbl_forward.2} parent=19 // pred_check_branch
        %147 = sbr.rel (%p145) target = $region24
      $region23: #{dbl_forward.2} parent=19 // pred_region
        %s148 = sadd.s32 %s17, %s18
        %s149 = smul.u32 32, %s148
        %p150 = scmp.lt.s32.totalorder %s149, 63
        %s151 = scalar_select %p150, %s149, 63
        %s152 = smul.addr %s151, 8
        %s153 = scalar_lea.vmem %s0, %s152
        %s154 = sadd.s32 %s17, %s18
        %s155 = smul.u32 32, %s154
      $region24: #{dbl_forward.2} parent=19 // pred_fallthru
        _
    $region20: #{dbl_forward.2} parent=5 // pred_fallthru
      _
    %p156 = scmp.le.s32.totalorder 1, %s10
    %p157 = scmp.lt.s32.totalorder %s10, 3
    %p158 = pnand %p156, %p157
    %p159 = pneg %p158
    // Predicated region
    $region25: #{dbl_forward.2} parent=5 // pred_check
      _
    $region26: #{dbl_forward.2} parent=5 // pred_check_branch
      %161 = sbr.rel (%p158) target = $region28
    $region27: #{dbl_forward.2} parent=5 // pred_region
      %s162 = ssub.s32 %s10, 1
      %s163 = sadd.s32 %s19, %s20
      %s164 = smul.u32 32, %s163
      %p165 = scmp.lt.s32.totalorder %s164, 63
      %s166 = scalar_select %p165, %s164, 63
      %s167 = smul.addr %s166, 8
      %s168 = scalar_lea.vmem %s0, %s167
      %p169 = pneg %p50
      %p170 = pneg %p47
      %p171 = pneg %p71
      %p172 = pneg %p68
      %p173 = pneg %p97
      %p174 = pneg %p94
      %p175 = scmp.lt.s32.totalorder %s19, 1
      %s176 = scalar_select %p175, %s19, 1
      %s177 = smul.addr %s176, 8
      %s178 = scalar_lea.vmem %s2, %s177
      %p179 = pneg %p123
      %p180 = pneg %p120
      %p181 = scmp.lt.s32.totalorder %s19, 1
      %s182 = scalar_select %p181, %s19, 1
      %s183 = smul.addr %s182, 8
      %s184 = scalar_lea.vmem %s3, %s183
      %s185 = sadd.s32 %s19, %s20
      %s186 = smul.u32 32, %s185
      %p187 = scmp.lt.s32.totalorder %s186, 63
      %s188 = scalar_select %p187, %s186, 63
      %s189 = smul.addr %s188, 8
      %s190 = scalar_lea.vmem %s0, %s189
      %s191 = sadd.s32 %s19, %s20
      %s192 = smul.u32 32, %s191
      %p193 = scmp.lt.s32.totalorder %s19, 1
      %s194 = scalar_select %p193, %s19, 1
      %s195 = smul.addr %s194, 8
      %s196 = scalar_lea.vmem %s2, %s195
      %p197 = scmp.lt.s32.totalorder %s19, 1
      %s198 = scalar_select %p197, %s19, 1
      %s199 = smul.addr %s198, 8
      %s200 = scalar_lea.vmem %s3, %s199
      %p201 = scmp.eq.s32.totalorder %s20, 0
      // Predicated region
      $region29: #{dbl_forward.2} parent=27 // pred_check
        %p202 = pneg %p201
      $region30: #{dbl_forward.2} parent=27 // pred_check_branch
        %204 = sbr.rel (%p202) target = $region32
      $region31: #{dbl_forward.2} parent=27 // pred_region
        %205 = vst [vmem:[%s196] sm:$0xff] 0.0
        %206 = vst [vmem:[%s200] sm:$0xff] 0.0
      $region32: #{dbl_forward.2} parent=27 // pred_fallthru
        _
      %v207 = vld [vmem:[%s190] sm:$0xff]
      %v208 = vld [vmem:[%s190 + $0x8] sm:$0xff]
      %v209 = vld [vmem:[%s190 + $0x10] sm:$0xff]
      %v210 = vld [vmem:[%s190 + $0x18] sm:$0xff]
      %v211 = vld [vmem:[%s190 + $0x20] sm:$0xff]
      %v212 = vld [vmem:[%s190 + $0x28] sm:$0xff]
      %v213 = vld [vmem:[%s190 + $0x30] sm:$0xff]
      %v214 = vld [vmem:[%s190 + $0x38] sm:$0xff]
      %v215 = vld [vmem:[%s190 + $0x40] sm:$0xff]
      %v216 = vld [vmem:[%s190 + $0x48] sm:$0xff]
      %v217 = vld [vmem:[%s190 + $0x50] sm:$0xff]
      %v218 = vld [vmem:[%s190 + $0x58] sm:$0xff]
      %v219 = vld [vmem:[%s190 + $0x60] sm:$0xff]
      %v220 = vld [vmem:[%s190 + $0x68] sm:$0xff]
      %v221 = vld [vmem:[%s190 + $0x70] sm:$0xff]
      %v222 = vld [vmem:[%s190 + $0x78] sm:$0xff]
      %v223 = vld [vmem:[%s190 + $0x80] sm:$0xff]
      %v224 = vld [vmem:[%s190 + $0x88] sm:$0xff]
      %v225 = vld [vmem:[%s190 + $0x90] sm:$0xff]
      %v226 = vld [vmem:[%s190 + $0x98] sm:$0xff]
      %v227 = vld [vmem:[%s190 + $0xa0] sm:$0xff]
      %v228 = vld [vmem:[%s190 + $0xa8] sm:$0xff]
      %v229 = vld [vmem:[%s190 + $0xb0] sm:$0xff]
      %v230 = vld [vmem:[%s190 + $0xb8] sm:$0xff]
      %v231 = vld [vmem:[%s190 + $0xc0] sm:$0xff]
      %v232 = vld [vmem:[%s190 + $0xc8] sm:$0xff]
      %v233 = vld [vmem:[%s190 + $0xd0] sm:$0xff]
      %v234 = vld [vmem:[%s190 + $0xd8] sm:$0xff]
      %v235 = vld [vmem:[%s190 + $0xe0] sm:$0xff]
      %v236 = vld [vmem:[%s190 + $0xe8] sm:$0xff]
      %v237 = vld [vmem:[%s190 + $0xf0] sm:$0xff]
      %v238 = vld [vmem:[%s190 + $0xf8] sm:$0xff]
      %v239 = vld [vmem:[%s1] sm:$0xff]
      %v240 = vld [vmem:[%s1 + $0x8] sm:$0xff]
      %v241 = vld [vmem:[%s1 + $0x10] sm:$0xff]
      %v242 = vld [vmem:[%s1 + $0x18] sm:$0xff]
      %v243 = vld [vmem:[%s1 + $0x20] sm:$0xff]
      %v244 = vld [vmem:[%s1 + $0x28] sm:$0xff]
      %v245 = vld [vmem:[%s1 + $0x30] sm:$0xff]
      %v246 = vld [vmem:[%s1 + $0x38] sm:$0xff]
      %v247 = vld [vmem:[%s1 + $0x40] sm:$0xff]
      %v248 = vld [vmem:[%s1 + $0x48] sm:$0xff]
      %v249 = vld [vmem:[%s1 + $0x50] sm:$0xff]
      %v250 = vld [vmem:[%s1 + $0x58] sm:$0xff]
      %v251 = vld [vmem:[%s1 + $0x60] sm:$0xff]
      %v252 = vld [vmem:[%s1 + $0x68] sm:$0xff]
      %v253 = vld [vmem:[%s1 + $0x70] sm:$0xff]
      %v254 = vld [vmem:[%s1 + $0x78] sm:$0xff]
      %255 = vmatpush.msra.mxu0 %v254
      %256 = vmatpush.msra.mxu0 %v253
      %257 = vmatpush.msra.mxu0 %v252
      %258 = vmatpush.msra.mxu0 %v251
      %259 = vmatpush.msra.mxu0 %v250
      %260 = vmatpush.msra.mxu0 %v249
      %261 = vmatpush.msra.mxu0 %v248
      %262 = vmatpush.msra.mxu0 %v247
      %263 = vmatpush.msra.mxu0 %v246
      %264 = vmatpush.msra.mxu0 %v245
      %265 = vmatpush.msra.mxu0 %v244
      %266 = vmatpush.msra.mxu0 %v243
      %267 = vmatpush.msra.mxu0 %v242
      %268 = vmatpush.msra.mxu0 %v241
      %269 = vmatpush.msra.mxu0 %v240
      %270 = vmatpush.msra.mxu0 %v239
      %271 = vmatmul.f32.gmra.mxu0 %v207
      %v272 = vpop.f32.mrf.mxu0
      %v273 = vadd.f32 0.0, %v272
      %274 = vmatmul.f32.gmra.mxu0 %v208
      %v275 = vpop.f32.mrf.mxu0
      %v276 = vadd.f32 0.0, %v275
      %277 = vmatmul.f32.gmra.mxu0 %v209
      %v278 = vpop.f32.mrf.mxu0
      %v279 = vadd.f32 0.0, %v278
      %280 = vmatmul.f32.gmra.mxu0 %v210
      %v281 = vpop.f32.mrf.mxu0
      %v282 = vadd.f32 0.0, %v281
      %283 = vmatmul.f32.gmra.mxu0 %v211
      %v284 = vpop.f32.mrf.mxu0
      %v285 = vadd.f32 0.0, %v284
      %286 = vmatmul.f32.gmra.mxu0 %v212
      %v287 = vpop.f32.mrf.mxu0
      %v288 = vadd.f32 0.0, %v287
      %289 = vmatmul.f32.gmra.mxu0 %v213
      %v290 = vpop.f32.mrf.mxu0
      %v291 = vadd.f32 0.0, %v290
      %292 = vmatmul.f32.gmra.mxu0 %v214
      %v293 = vpop.f32.mrf.mxu0
      %v294 = vadd.f32 0.0, %v293
      %295 = vmatmul.f32.gmra.mxu0 %v215
      %v296 = vpop.f32.mrf.mxu0
      %v297 = vadd.f32 0.0, %v296
      %298 = vmatmul.f32.gmra.mxu0 %v216
      %v299 = vpop.f32.mrf.mxu0
      %v300 = vadd.f32 0.0, %v299
      %301 = vmatmul.f32.gmra.mxu0 %v217
      %v302 = vpop.f32.mrf.mxu0
      %v303 = vadd.f32 0.0, %v302
      %304 = vmatmul.f32.gmra.mxu0 %v218
      %v305 = vpop.f32.mrf.mxu0
      %v306 = vadd.f32 0.0, %v305
      %307 = vmatmul.f32.gmra.mxu0 %v219
      %v308 = vpop.f32.mrf.mxu0
      %v309 = vadd.f32 0.0, %v308
      %310 = vmatmul.f32.gmra.mxu0 %v220
      %v311 = vpop.f32.mrf.mxu0
      %v312 = vadd.f32 0.0, %v311
      %313 = vmatmul.f32.gmra.mxu0 %v221
      %v314 = vpop.f32.mrf.mxu0
      %v315 = vadd.f32 0.0, %v314
      %316 = vmatmul.f32.gmra.mxu0 %v222
      %v317 = vpop.f32.mrf.mxu0
      %v318 = vadd.f32 0.0, %v317
      %319 = vmatmul.f32.gmra.mxu0 %v223
      %v320 = vpop.f32.mrf.mxu0
      %v321 = vadd.f32 0.0, %v320
      %322 = vmatmul.f32.gmra.mxu0 %v224
      %v323 = vpop.f32.mrf.mxu0
      %v324 = vadd.f32 0.0, %v323
      %325 = vmatmul.f32.gmra.mxu0 %v225
      %v326 = vpop.f32.mrf.mxu0
      %v327 = vadd.f32 0.0, %v326
      %328 = vmatmul.f32.gmra.mxu0 %v226
      %v329 = vpop.f32.mrf.mxu0
      %v330 = vadd.f32 0.0, %v329
      %331 = vmatmul.f32.gmra.mxu0 %v227
      %v332 = vpop.f32.mrf.mxu0
      %v333 = vadd.f32 0.0, %v332
      %334 = vmatmul.f32.gmra.mxu0 %v228
      %v335 = vpop.f32.mrf.mxu0
      %v336 = vadd.f32 0.0, %v335
      %337 = vmatmul.f32.gmra.mxu0 %v229
      %v338 = vpop.f32.mrf.mxu0
      %v339 = vadd.f32 0.0, %v338
      %340 = vmatmul.f32.gmra.mxu0 %v230
      %v341 = vpop.f32.mrf.mxu0
      %v342 = vadd.f32 0.0, %v341
      %343 = vmatmul.f32.gmra.mxu0 %v231
      %v344 = vpop.f32.mrf.mxu0
      %v345 = vadd.f32 0.0, %v344
      %346 = vmatmul.f32.gmra.mxu0 %v232
      %v347 = vpop.f32.mrf.mxu0
      %v348 = vadd.f32 0.0, %v347
      %349 = vmatmul.f32.gmra.mxu0 %v233
      %v350 = vpop.f32.mrf.mxu0
      %v351 = vadd.f32 0.0, %v350
      %352 = vmatmul.f32.gmra.mxu0 %v234
      %v353 = vpop.f32.mrf.mxu0
      %v354 = vadd.f32 0.0, %v353
      %355 = vmatmul.f32.gmra.mxu0 %v235
      %v356 = vpop.f32.mrf.mxu0
      %v357 = vadd.f32 0.0, %v356
      %358 = vmatmul.f32.gmra.mxu0 %v236
      %v359 = vpop.f32.mrf.mxu0
      %v360 = vadd.f32 0.0, %v359
      %361 = vmatmul.f32.gmra.mxu0 %v237
      %v362 = vpop.f32.mrf.mxu0
      %v363 = vadd.f32 0.0, %v362
      %364 = vmatmul.f32.gmra.mxu0 %v238
      %v365 = vpop.f32.mrf.mxu0
      %v366 = vadd.f32 0.0, %v365
      %367 = vdwg.mxu0
      %v368 = vld [vmem:[%s196] sm:$0xff]
      %v369 = vadd.f32 %v273, %v276
      %v370 = vadd.f32 %v369, %v279
      %v371 = vadd.f32 %v370, %v282
      %v372 = vadd.f32 %v371, %v285
      %v373 = vadd.f32 %v372, %v288
      %v374 = vadd.f32 %v373, %v291
      %v375 = vadd.f32 %v374, %v294
      %v376 = vadd.f32 %v375, %v297
      %v377 = vadd.f32 %v376, %v300
      %v378 = vadd.f32 %v377, %v303
      %v379 = vadd.f32 %v378, %v306
      %v380 = vadd.f32 %v379, %v309
      %v381 = vadd.f32 %v380, %v312
      %v382 = vadd.f32 %v381, %v315
      %v383 = vadd.f32 %v382, %v318
      %v384 = vadd.f32 %v383, %v321
      %v385 = vadd.f32 %v384, %v324
      %v386 = vadd.f32 %v385, %v327
      %v387 = vadd.f32 %v386, %v330
      %v388 = vadd.f32 %v387, %v333
      %v389 = vadd.f32 %v388, %v336
      %v390 = vadd.f32 %v389, %v339
      %v391 = vadd.f32 %v390, %v342
      %v392 = vadd.f32 %v391, %v345
      %v393 = vadd.f32 %v392, %v348
      %v394 = vadd.f32 %v393, %v351
      %v395 = vadd.f32 %v394, %v354
      %v396 = vadd.f32 %v395, %v357
      %v397 = vadd.f32 %v396, %v360
      %v398 = vadd.f32 %v397, %v363
      %v399 = vadd.f32 %v398, %v366
      %v400 = vrot.slane %v399, 4
      %v401 = vadd.f32 %v399, %v400
      %v402 = vrot.slane %v401, 2
      %v403 = vadd.f32 %v401, %v402
      %v404 = vrot.slane %v403, 1
      %v405 = vadd.f32 %v403, %v404
      %v406 = vadd.f32 %v368, %v405
      %407 = vst [vmem:[%s196] sm:$0xff] %v406
      %v408 = vld [vmem:[%s200] sm:$0xff]
      %v409 = vmul.f32 %v273, %v273
      %v410 = vmul.f32 %v276, %v276
      %v411 = vmul.f32 %v279, %v279
      %v412 = vmul.f32 %v282, %v282
      %v413 = vmul.f32 %v285, %v285
      %v414 = vmul.f32 %v288, %v288
      %v415 = vmul.f32 %v291, %v291
      %v416 = vmul.f32 %v294, %v294
      %v417 = vmul.f32 %v297, %v297
      %v418 = vmul.f32 %v300, %v300
      %v419 = vmul.f32 %v303, %v303
      %v420 = vmul.f32 %v306, %v306
      %v421 = vmul.f32 %v309, %v309
      %v422 = vmul.f32 %v312, %v312
      %v423 = vmul.f32 %v315, %v315
      %v424 = vmul.f32 %v318, %v318
      %v425 = vmul.f32 %v321, %v321
      %v426 = vmul.f32 %v324, %v324
      %v427 = vmul.f32 %v327, %v327
      %v428 = vmul.f32 %v330, %v330
      %v429 = vmul.f32 %v333, %v333
      %v430 = vmul.f32 %v336, %v336
      %v431 = vmul.f32 %v339, %v339
      %v432 = vmul.f32 %v342, %v342
      %v433 = vmul.f32 %v345, %v345
      %v434 = vmul.f32 %v348, %v348
      %v435 = vmul.f32 %v351, %v351
      %v436 = vmul.f32 %v354, %v354
      %v437 = vmul.f32 %v357, %v357
      %v438 = vmul.f32 %v360, %v360
      %v439 = vmul.f32 %v363, %v363
      %v440 = vmul.f32 %v366, %v366
      %v441 = vadd.f32 %v409, %v410
      %v442 = vadd.f32 %v441, %v411
      %v443 = vadd.f32 %v442, %v412
      %v444 = vadd.f32 %v443, %v413
      %v445 = vadd.f32 %v444, %v414
      %v446 = vadd.f32 %v445, %v415
      %v447 = vadd.f32 %v446, %v416
      %v448 = vadd.f32 %v447, %v417
      %v449 = vadd.f32 %v448, %v418
      %v450 = vadd.f32 %v449, %v419
      %v451 = vadd.f32 %v450, %v420
      %v452 = vadd.f32 %v451, %v421
      %v453 = vadd.f32 %v452, %v422
      %v454 = vadd.f32 %v453, %v423
      %v455 = vadd.f32 %v454, %v424
      %v456 = vadd.f32 %v455, %v425
      %v457 = vadd.f32 %v456, %v426
      %v458 = vadd.f32 %v457, %v427
      %v459 = vadd.f32 %v458, %v428
      %v460 = vadd.f32 %v459, %v429
      %v461 = vadd.f32 %v460, %v430
      %v462 = vadd.f32 %v461, %v431
      %v463 = vadd.f32 %v462, %v432
      %v464 = vadd.f32 %v463, %v433
      %v465 = vadd.f32 %v464, %v434
      %v466 = vadd.f32 %v465, %v435
      %v467 = vadd.f32 %v466, %v436
      %v468 = vadd.f32 %v467, %v437
      %v469 = vadd.f32 %v468, %v438
      %v470 = vadd.f32 %v469, %v439
      %v471 = vadd.f32 %v470, %v440
      %v472 = vrot.slane %v471, 4
      %v473 = vadd.f32 %v471, %v472
      %v474 = vrot.slane %v473, 2
      %v475 = vadd.f32 %v473, %v474
      %v476 = vrot.slane %v475, 1
      %v477 = vadd.f32 %v475, %v476
      %v478 = vadd.f32 %v408, %v477
      %479 = vst [vmem:[%s200] sm:$0xff] %v478
      %p480 = scmp.lt.s32.totalorder %s19, 1
      %s481 = scalar_select %p480, %s19, 1
      %s482 = smul.addr %s481, 8
      %s483 = scalar_lea.vmem %s2, %s482
      %p484 = scmp.lt.s32.totalorder %s19, 1
      %s485 = scalar_select %p484, %s19, 1
      %s486 = smul.addr %s485, 8
      %s487 = scalar_lea.vmem %s3, %s486
      // Predicated region
      $region33: #{dbl_forward.2} parent=27 // pred_check
        %p488 = pneg %p94
      $region34: #{dbl_forward.2} parent=27 // pred_check_branch
        %490 = sbr.rel (%p488) target = $region36
      $region35: #{dbl_forward.2} parent=27 // pred_region
        _
      $region36: #{dbl_forward.2} parent=27 // pred_fallthru
        _
      // Predicated region
      $region37: #{dbl_forward.2} parent=27 // pred_check
        %p491 = pneg %p120
      $region38: #{dbl_forward.2} parent=27 // pred_check_branch
        %493 = sbr.rel (%p491) target = $region40
      $region39: #{dbl_forward.2} parent=27 // pred_region
        _
      $region40: #{dbl_forward.2} parent=27 // pred_fallthru
        _
    $region28: #{dbl_forward.2} parent=5 // pred_fallthru
      _
    %p494 = scmp.le.s32.totalorder 2, %s10
    // Predicated region
    $region41: #{dbl_forward.2} parent=5 // pred_check
      %p495 = pneg %p494
    $region42: #{dbl_forward.2} parent=5 // pred_check_branch
      %497 = sbr.rel (%p495) target = $region44
    $region43: #{dbl_forward.2} parent=5 // pred_region
      %s498 = ssub.s32 %s10, 2
      // Predicated region
      $region45: #{dbl_forward.2} parent=43 // pred_check
        %p499 = pneg %p100
      $region46: #{dbl_forward.2} parent=43 // pred_check_branch
        %501 = sbr.rel (%p499) target = $region48
      $region47: #{dbl_forward.2} parent=43 // pred_region
        %p502 = scmp.lt.s32.totalorder %s21, 1
        %s503 = scalar_select %p502, %s21, 1
        %s504 = smul.addr %s503, 8
        %s505 = scalar_lea.vmem %s2, %s504
      $region48: #{dbl_forward.2} parent=43 // pred_fallthru
        _
      // Predicated region
      $region49: #{dbl_forward.2} parent=43 // pred_check
        %p506 = pneg %p126
      $region50: #{dbl_forward.2} parent=43 // pred_check_branch
        %508 = sbr.rel (%p506) target = $region52
      $region51: #{dbl_forward.2} parent=43 // pred_region
        %p509 = scmp.lt.s32.totalorder %s21, 1
        %s510 = scalar_select %p509, %s21, 1
        %s511 = smul.addr %s510, 8
        %s512 = scalar_lea.vmem %s3, %s511
      $region52: #{dbl_forward.2} parent=43 // pred_fallthru
        _
    $region44: #{dbl_forward.2} parent=5 // pred_fallthru
      _
  $region6: #{dbl_forward.2} parent=0 // loop_footer
    %s14 = sadd.s32 1, %s10
  $region7: #{dbl_forward.2} parent=0 // loop_footer_branch
    %9 = sbr.rel target = $region3
  $region8: #{dbl_forward.2} parent=0 // loop_exit
    _

// kernel: dbl_forward.3
$region0: #{dbl_forward.3}
  #allocation0 [shape = 'u32[]', space=smem, size = 0x4, offset = 0x4, fixed_abs, tag = 'smem constant byte address 0x4 - core index']
  #allocation1 [shape = 'u32[72,128]{1,0:T(1,128)}', space=vmem, size = 0x9000, scoped, tag = 'internal scratch']
  %s0 = inlined_call_operand.vmem [shape: f32[512,128], index: 0, kind: input, shape index: {}]
  %s1 = inlined_call_operand.vmem [shape: f32[128,128], index: 1, kind: input, shape index: {}]
  %s2 = inlined_call_operand.vmem [shape: f32[1,128], index: 2, kind: input, shape index: {}]
  %s3 = inlined_call_operand.vmem [shape: f32[1,128], index: 3, kind: input, shape index: {}]
  %s4 = inlined_call_operand.vmem [shape: f32[512,128], index: 4, kind: output, shape index: {}]
  %s5 = sld [smem:[#allocation0]]
  $region49: #{dbl_forward.3} parent=0
    _
  %s7 = ssub.s32 1, %s5
  %s8 = scalar_select 0, %s7, %s5
  loop: start=0, step=1, limit=4
  $region2: #{dbl_forward.3} parent=0 // loop_pre_header
    _
  $region3: #{dbl_forward.3} parent=0 // loop_header
    %s10 = sphi 0, %s14
    %p11 = scmp.ge.s32.totalorder %s10, 4
    %s20 = sphi 0, %s22
    %s23 = sphi 0, %s20
    %s24 = sphi 0, %s23
    %s40 = sphi 0, %s24
    %s44 = sphi 0, %s44
    %s46 = sphi 0, %s44
    %s47 = sphi 0, %s46
    %s61 = sphi 0, %s47
    %s65 = sphi 0, %s65
    %s67 = sphi 0, %s65
    %s68 = sphi 0, %s67
    %s82 = sphi 0, %s68
    %s86 = sphi 0, %s86
    %s88 = sphi 0, %s86
    %s89 = sphi 0, %s88
    %s103 = sphi 0, %s89
    %s109 = sphi 0, %s111
    %s112 = sphi 0, %s109
    %s113 = sphi 0, %s112
    %s129 = sphi 0, %s113
  $region4: #{dbl_forward.3} parent=0 // loop_header_branch
    %13 = sbr.rel (%p11) target = $region8
  $region5: #{dbl_forward.3} parent=0 // loop_body
    %s15 = ssub.s32 %s10, 1
    %s16 = ssub.s32 %s10, 2
    %s17 = sadd.s32 %s10, 1
    %s18 = ssub.s32 %s10, %s17
    %p19 = scmp.eq.s32.totalorder %s18, 0
    %s21 = sadd.s32 %s20, 1
    %s22 = scalar_select %p19, %s20, %s21
    %p25 = pneg %p19
    %p26 = scmp.eq.s32.totalorder %s10, 1
    %p27 = por %p25, %p26
    %p28 = scmp.ne.s32.totalorder %s20, %s23
    %p29 = scmp.eq.s32.totalorder %s10, 0
    %p30 = por %p28, %p29
    %p31 = scmp.ne.s32.totalorder %s20, %s23
    %p32 = scmp.eq.s32.totalorder %s15, 1
    %p33 = por %p31, %p32
    %p34 = scmp.ne.s32.totalorder %s23, %s24
    %p35 = scmp.eq.s32.totalorder %s15, 0
    %p36 = por %p34, %p35
    %p37 = scmp.ne.s32.totalorder %s23, %s24
    %p38 = scmp.eq.s32.totalorder %s16, 1
    %p39 = por %p37, %p38
    %p41 = scmp.ne.s32.totalorder %s24, %s40
    %p42 = scmp.eq.s32.totalorder %s16, 0
    %p43 = por %p41, %p42
    %s45 = sadd.s32 %s44, 1
    %p48 = scmp.eq.s32.totalorder %s10, 1
    %p49 = scmp.ne.s32.totalorder %s44, %s46
    %p50 = scmp.eq.s32.totalorder %s10, 0
    %p51 = por %p49, %p50
    %p52 = scmp.ne.s32.totalorder %s44, %s46
    %p53 = scmp.eq.s32.totalorder %s15, 1
    %p54 = por %p52, %p53
    %p55 = scmp.ne.s32.totalorder %s46, %s47
    %p56 = scmp.eq.s32.totalorder %s15, 0
    %p57 = por %p55, %p56
    %p58 = scmp.ne.s32.totalorder %s46, %s47
    %p59 = scmp.eq.s32.totalorder %s16, 1
    %p60 = por %p58, %p59
    %p62 = scmp.ne.s32.totalorder %s47, %s61
    %p63 = scmp.eq.s32.totalorder %s16, 0
    %p64 = por %p62, %p63
    %s66 = sadd.s32 %s65, 1
    %p69 = scmp.eq.s32.totalorder %s10, 1
    %p70 = scmp.ne.s32.totalorder %s65, %s67
    %p71 = scmp.eq.s32.totalorder %s10, 0
    %p72 = por %p70, %p71
    %p73 = scmp.ne.s32.totalorder %s65, %s67
    %p74 = scmp.eq.s32.totalorder %s15, 1
    %p75 = por %p73, %p74
    %p76 = scmp.ne.s32.totalorder %s67, %s68
    %p77 = scmp.eq.s32.totalorder %s15, 0
    %p78 = por %p76, %p77
    %p79 = scmp.ne.s32.totalorder %s67, %s68
    %p80 = scmp.eq.s32.totalorder %s16, 1
    %p81 = por %p79, %p80
    %p83 = scmp.ne.s32.totalorder %s68, %s82
    %p84 = scmp.eq.s32.totalorder %s16, 0
    %p85 = por %p83, %p84
    %s87 = sadd.s32 %s86, 1
    %p90 = scmp.eq.s32.totalorder %s10, 1
    %p91 = scmp.ne.s32.totalorder %s86, %s88
    %p92 = scmp.eq.s32.totalorder %s10, 0
    %p93 = por %p91, %p92
    %p94 = scmp.ne.s32.totalorder %s86, %s88
    %p95 = scmp.eq.s32.totalorder %s15, 1
    %p96 = por %p94, %p95
    %p97 = scmp.ne.s32.totalorder %s88, %s89
    %p98 = scmp.eq.s32.totalorder %s15, 0
    %p99 = por %p97, %p98
    %p100 = scmp.ne.s32.totalorder %s88, %s89
    %p101 = scmp.eq.s32.totalorder %s16, 1
    %p102 = por %p100, %p101
    %p104 = scmp.ne.s32.totalorder %s89, %s103
    %p105 = scmp.eq.s32.totalorder %s16, 0
    %p106 = por %p104, %p105
    %s107 = ssub.s32 %s10, %s17
    %p108 = scmp.eq.s32.totalorder %s107, 0
    %s110 = sadd.s32 %s109, 1
    %s111 = scalar_select %p108, %s109, %s110
    %p114 = pneg %p108
    %p115 = scmp.eq.s32.totalorder %s10, 1
    %p116 = por %p114, %p115
    %p117 = scmp.ne.s32.totalorder %s109, %s112
    %p118 = scmp.eq.s32.totalorder %s10, 0
    %p119 = por %p117, %p118
    %p120 = scmp.ne.s32.totalorder %s109, %s112
    %p121 = scmp.eq.s32.totalorder %s15, 1
    %p122 = por %p120, %p121
    %p123 = scmp.ne.s32.totalorder %s112, %s113
    %p124 = scmp.eq.s32.totalorder %s15, 0
    %p125 = por %p123, %p124
    %p126 = scmp.ne.s32.totalorder %s112, %s113
    %p127 = scmp.eq.s32.totalorder %s16, 1
    %p128 = por %p126, %p127
    %p130 = scmp.ne.s32.totalorder %s113, %s129
    %p131 = scmp.eq.s32.totalorder %s16, 0
    %p132 = por %p130, %p131
    %p133 = scmp.le.s32.totalorder 1, %s10
    %p134 = scmp.lt.s32.totalorder %s10, 3
    %p135 = pnand %p133, %p134
    %p136 = pneg %p135
    // Predicated region
    $region9: #{dbl_forward.3} parent=5 // pred_check
      _
    $region10: #{dbl_forward.3} parent=5 // pred_check_branch
      %138 = sbr.rel (%p135) target = $region12
    $region11: #{dbl_forward.3} parent=5 // pred_region
      %s139 = ssub.s32 %s10, 1
      // Predicated region
      $region13: #{dbl_forward.3} parent=11 // pred_check
        %p140 = pneg %p57
      $region14: #{dbl_forward.3} parent=11 // pred_check_branch
        %142 = sbr.rel (%p140) target = $region16
      $region15: #{dbl_forward.3} parent=11 // pred_region
        _
      $region16: #{dbl_forward.3} parent=11 // pred_fallthru
        _
      // Predicated region
      $region17: #{dbl_forward.3} parent=11 // pred_check
        %p143 = pneg %p78
      $region18: #{dbl_forward.3} parent=11 // pred_check_branch
        %145 = sbr.rel (%p143) target = $region20
      $region19: #{dbl_forward.3} parent=11 // pred_region
        _
      $region20: #{dbl_forward.3} parent=11 // pred_fallthru
        _
      // Predicated region
      $region21: #{dbl_forward.3} parent=11 // pred_check
        %p146 = pneg %p99
      $region22: #{dbl_forward.3} parent=11 // pred_check_branch
        %148 = sbr.rel (%p146) target = $region24
      $region23: #{dbl_forward.3} parent=11 // pred_region
        _
      $region24: #{dbl_forward.3} parent=11 // pred_fallthru
        _
    $region12: #{dbl_forward.3} parent=5 // pred_fallthru
      _
    %p149 = scmp.lt.s32.totalorder %s10, 2
    // Predicated region
    $region25: #{dbl_forward.3} parent=5 // pred_check
      %p150 = pneg %p149
    $region26: #{dbl_forward.3} parent=5 // pred_check_branch
      %152 = sbr.rel (%p150) target = $region28
    $region27: #{dbl_forward.3} parent=5 // pred_region
      // Predicated region
      $region29: #{dbl_forward.3} parent=27 // pred_check
        %p153 = pneg %p30
      $region30: #{dbl_forward.3} parent=27 // pred_check_branch
        %155 = sbr.rel (%p153) target = $region32
      $region31: #{dbl_forward.3} parent=27 // pred_region
        %s156 = smul.u32 32, %s10
        %p157 = scmp.lt.s32.totalorder %s156, 63
        %s158 = scalar_select %p157, %s156, 63
        %s159 = smul.addr %s158, 8
        %s160 = scalar_lea.vmem %s0, %s159
        %s161 = smul.u32 32, %s10
      $region32: #{dbl_forward.3} parent=27 // pred_fallthru
        _
    $region28: #{dbl_forward.3} parent=5 // pred_fallthru
      _
    %p162 = scmp.le.s32.totalorder 1, %s10
    %p163 = scmp.lt.s32.totalorder %s10, 3
    %p164 = pnand %p162, %p163
    %p165 = pneg %p164
    // Predicated region
    $region33: #{dbl_forward.3} parent=5 // pred_check
      _
    $region34: #{dbl_forward.3} parent=5 // pred_check_branch
      %167 = sbr.rel (%p164) target = $region36
    $region35: #{dbl_forward.3} parent=5 // pred_region
      %s168 = ssub.s32 %s10, 1
      %s169 = smul.u32 32, %s15
      %p170 = scmp.lt.s32.totalorder %s169, 63
      %s171 = scalar_select %p170, %s169, 63
      %s172 = smul.addr %s171, 8
      %s173 = scalar_lea.vmem %s0, %s172
      %p174 = pneg %p36
      %p175 = pneg %p33
      %p176 = pneg %p57
      %p177 = pneg %p54
      %p178 = pneg %p78
      %p179 = pneg %p75
      %p180 = pneg %p99
      %p181 = pneg %p96
      %p182 = pneg %p125
      %p183 = pneg %p122
      %s184 = smul.u32 32, %s15
      %p185 = scmp.lt.s32.totalorder %s184, 63
      %s186 = scalar_select %p185, %s184, 63
      %s187 = smul.addr %s186, 8
      %s188 = scalar_lea.vmem %s4, %s187
      %s189 = smul.u32 32, %s15
      %p190 = scmp.lt.s32.totalorder %s189, 63
      %s191 = scalar_select %p190, %s189, 63
      %s192 = smul.addr %s191, 8
      %s193 = scalar_lea.vmem %s0, %s192
      %s194 = smul.u32 32, %s15
      %s195 = smul.u32 32, %s15
      %p196 = scmp.lt.s32.totalorder %s195, 63
      %s197 = scalar_select %p196, %s195, 63
      %s198 = smul.addr %s197, 8
      %s199 = scalar_lea.vmem %s4, %s198
      %s200 = smul.u32 32, %s15
      %v201 = vld [vmem:[%s193] sm:$0xff]
      %v202 = vld [vmem:[%s193 + $0x8] sm:$0xff]
      %v203 = vld [vmem:[%s193 + $0x10] sm:$0xff]
      %v204 = vld [vmem:[%s193 + $0x18] sm:$0xff]
      %v205 = vld [vmem:[%s193 + $0x20] sm:$0xff]
      %v206 = vld [vmem:[%s193 + $0x28] sm:$0xff]
      %v207 = vld [vmem:[%s193 + $0x30] sm:$0xff]
      %v208 = vld [vmem:[%s193 + $0x38] sm:$0xff]
      %v209 = vld [vmem:[%s193 + $0x40] sm:$0xff]
      %v210 = vld [vmem:[%s193 + $0x48] sm:$0xff]
      %v211 = vld [vmem:[%s193 + $0x50] sm:$0xff]
      %v212 = vld [vmem:[%s193 + $0x58] sm:$0xff]
      %v213 = vld [vmem:[%s193 + $0x60] sm:$0xff]
      %v214 = vld [vmem:[%s193 + $0x68] sm:$0xff]
      %v215 = vld [vmem:[%s193 + $0x70] sm:$0xff]
      %v216 = vld [vmem:[%s193 + $0x78] sm:$0xff]
      %v217 = vld [vmem:[%s193 + $0x80] sm:$0xff]
      %v218 = vld [vmem:[%s193 + $0x88] sm:$0xff]
      %v219 = vld [vmem:[%s193 + $0x90] sm:$0xff]
      %v220 = vld [vmem:[%s193 + $0x98] sm:$0xff]
      %v221 = vld [vmem:[%s193 + $0xa0] sm:$0xff]
      %v222 = vld [vmem:[%s193 + $0xa8] sm:$0xff]
      %v223 = vld [vmem:[%s193 + $0xb0] sm:$0xff]
      %v224 = vld [vmem:[%s193 + $0xb8] sm:$0xff]
      %v225 = vld [vmem:[%s193 + $0xc0] sm:$0xff]
      %v226 = vld [vmem:[%s193 + $0xc8] sm:$0xff]
      %v227 = vld [vmem:[%s193 + $0xd0] sm:$0xff]
      %v228 = vld [vmem:[%s193 + $0xd8] sm:$0xff]
      %v229 = vld [vmem:[%s193 + $0xe0] sm:$0xff]
      %v230 = vld [vmem:[%s193 + $0xe8] sm:$0xff]
      %v231 = vld [vmem:[%s193 + $0xf0] sm:$0xff]
      %v232 = vld [vmem:[%s193 + $0xf8] sm:$0xff]
      %v233 = vld [vmem:[%s1] sm:$0xff]
      %v234 = vld [vmem:[%s1 + $0x8] sm:$0xff]
      %v235 = vld [vmem:[%s1 + $0x10] sm:$0xff]
      %v236 = vld [vmem:[%s1 + $0x18] sm:$0xff]
      %v237 = vld [vmem:[%s1 + $0x20] sm:$0xff]
      %v238 = vld [vmem:[%s1 + $0x28] sm:$0xff]
      %v239 = vld [vmem:[%s1 + $0x30] sm:$0xff]
      %v240 = vld [vmem:[%s1 + $0x38] sm:$0xff]
      %v241 = vld [vmem:[%s1 + $0x40] sm:$0xff]
      %v242 = vld [vmem:[%s1 + $0x48] sm:$0xff]
      %v243 = vld [vmem:[%s1 + $0x50] sm:$0xff]
      %v244 = vld [vmem:[%s1 + $0x58] sm:$0xff]
      %v245 = vld [vmem:[%s1 + $0x60] sm:$0xff]
      %v246 = vld [vmem:[%s1 + $0x68] sm:$0xff]
      %v247 = vld [vmem:[%s1 + $0x70] sm:$0xff]
      %v248 = vld [vmem:[%s1 + $0x78] sm:$0xff]
      %249 = vmatpush.msra.mxu0 %v248
      %250 = vmatpush.msra.mxu0 %v247
      %251 = vmatpush.msra.mxu0 %v246
      %252 = vmatpush.msra.mxu0 %v245
      %253 = vmatpush.msra.mxu0 %v244
      %254 = vmatpush.msra.mxu0 %v243
      %255 = vmatpush.msra.mxu0 %v242
      %256 = vmatpush.msra.mxu0 %v241
      %257 = vmatpush.msra.mxu0 %v240
      %258 = vmatpush.msra.mxu0 %v239
      %259 = vmatpush.msra.mxu0 %v238
      %260 = vmatpush.msra.mxu0 %v237
      %261 = vmatpush.msra.mxu0 %v236
      %262 = vmatpush.msra.mxu0 %v235
      %263 = vmatpush.msra.mxu0 %v234
      %264 = vmatpush.msra.mxu0 %v233
      %265 = vmatmul.f32.gmra.mxu0 %v201
      %v266 = vpop.f32.mrf.mxu0
      %v267 = vadd.f32 0.0, %v266
      %268 = vmatmul.f32.gmra.mxu0 %v202
      %v269 = vpop.f32.mrf.mxu0
      %v270 = vadd.f32 0.0, %v269
      %271 = vmatmul.f32.gmra.mxu0 %v203
      %v272 = vpop.f32.mrf.mxu0
      %v273 = vadd.f32 0.0, %v272
      %274 = vmatmul.f32.gmra.mxu0 %v204
      %v275 = vpop.f32.mrf.mxu0
      %v276 = vadd.f32 0.0, %v275
      %277 = vmatmul.f32.gmra.mxu0 %v205
      %v278 = vpop.f32.mrf.mxu0
      %v279 = vadd.f32 0.0, %v278
      %280 = vmatmul.f32.gmra.mxu0 %v206
      %v281 = vpop.f32.mrf.mxu0
      %v282 = vadd.f32 0.0, %v281
      %283 = vmatmul.f32.gmra.mxu0 %v207
      %v284 = vpop.f32.mrf.mxu0
      %v285 = vadd.f32 0.0, %v284
      %286 = vmatmul.f32.gmra.mxu0 %v208
      %v287 = vpop.f32.mrf.mxu0
      %v288 = vadd.f32 0.0, %v287
      %289 = vmatmul.f32.gmra.mxu0 %v209
      %v290 = vpop.f32.mrf.mxu0
      %v291 = vadd.f32 0.0, %v290
      %292 = vmatmul.f32.gmra.mxu0 %v210
      %v293 = vpop.f32.mrf.mxu0
      %v294 = vadd.f32 0.0, %v293
      %295 = vmatmul.f32.gmra.mxu0 %v211
      %v296 = vpop.f32.mrf.mxu0
      %v297 = vadd.f32 0.0, %v296
      %298 = vmatmul.f32.gmra.mxu0 %v212
      %v299 = vpop.f32.mrf.mxu0
      %v300 = vadd.f32 0.0, %v299
      %301 = vmatmul.f32.gmra.mxu0 %v213
      %v302 = vpop.f32.mrf.mxu0
      %v303 = vadd.f32 0.0, %v302
      %304 = vmatmul.f32.gmra.mxu0 %v214
      %v305 = vpop.f32.mrf.mxu0
      %v306 = vadd.f32 0.0, %v305
      %307 = vmatmul.f32.gmra.mxu0 %v215
      %v308 = vpop.f32.mrf.mxu0
      %v309 = vadd.f32 0.0, %v308
      %310 = vmatmul.f32.gmra.mxu0 %v216
      %v311 = vpop.f32.mrf.mxu0
      %v312 = vadd.f32 0.0, %v311
      %313 = vmatmul.f32.gmra.mxu0 %v217
      %v314 = vpop.f32.mrf.mxu0
      %v315 = vadd.f32 0.0, %v314
      %316 = vmatmul.f32.gmra.mxu0 %v218
      %v317 = vpop.f32.mrf.mxu0
      %v318 = vadd.f32 0.0, %v317
      %319 = vmatmul.f32.gmra.mxu0 %v219
      %v320 = vpop.f32.mrf.mxu0
      %v321 = vadd.f32 0.0, %v320
      %322 = vmatmul.f32.gmra.mxu0 %v220
      %v323 = vpop.f32.mrf.mxu0
      %v324 = vadd.f32 0.0, %v323
      %325 = vmatmul.f32.gmra.mxu0 %v221
      %v326 = vpop.f32.mrf.mxu0
      %v327 = vadd.f32 0.0, %v326
      %328 = vmatmul.f32.gmra.mxu0 %v222
      %v329 = vpop.f32.mrf.mxu0
      %v330 = vadd.f32 0.0, %v329
      %331 = vmatmul.f32.gmra.mxu0 %v223
      %v332 = vpop.f32.mrf.mxu0
      %v333 = vadd.f32 0.0, %v332
      %334 = vmatmul.f32.gmra.mxu0 %v224
      %v335 = vpop.f32.mrf.mxu0
      %v336 = vadd.f32 0.0, %v335
      %337 = vmatmul.f32.gmra.mxu0 %v225
      %v338 = vpop.f32.mrf.mxu0
      %v339 = vadd.f32 0.0, %v338
      %340 = vmatmul.f32.gmra.mxu0 %v226
      %v341 = vpop.f32.mrf.mxu0
      %v342 = vadd.f32 0.0, %v341
      %343 = vmatmul.f32.gmra.mxu0 %v227
      %v344 = vpop.f32.mrf.mxu0
      %v345 = vadd.f32 0.0, %v344
      %346 = vmatmul.f32.gmra.mxu0 %v228
      %v347 = vpop.f32.mrf.mxu0
      %v348 = vadd.f32 0.0, %v347
      %349 = vmatmul.f32.gmra.mxu0 %v229
      %v350 = vpop.f32.mrf.mxu0
      %v351 = vadd.f32 0.0, %v350
      %352 = vmatmul.f32.gmra.mxu0 %v230
      %v353 = vpop.f32.mrf.mxu0
      %v354 = vadd.f32 0.0, %v353
      %355 = vmatmul.f32.gmra.mxu0 %v231
      %v356 = vpop.f32.mrf.mxu0
      %v357 = vadd.f32 0.0, %v356
      %358 = vmatmul.f32.gmra.mxu0 %v232
      %v359 = vpop.f32.mrf.mxu0
      %v360 = vadd.f32 0.0, %v359
      %361 = vdwg.mxu0
      %v362 = vld [vmem:[%s2] sm:$0x1]
      %v364 = vperm.slane %v362, 0
      %v366 = vmul.f32 %v267, %v364
      %v367 = vmul.f32 %v270, %v364
      %v368 = vmul.f32 %v273, %v364
      %v369 = vmul.f32 %v276, %v364
      %v370 = vmul.f32 %v279, %v364
      %v371 = vmul.f32 %v282, %v364
      %v372 = vmul.f32 %v285, %v364
      %v373 = vmul.f32 %v288, %v364
      %v374 = vmul.f32 %v291, %v364
      %v375 = vmul.f32 %v294, %v364
      %v376 = vmul.f32 %v297, %v364
      %v377 = vmul.f32 %v300, %v364
      %v378 = vmul.f32 %v303, %v364
      %v379 = vmul.f32 %v306, %v364
      %v380 = vmul.f32 %v309, %v364
      %v381 = vmul.f32 %v312, %v364
      %v382 = vmul.f32 %v315, %v364
      %v383 = vmul.f32 %v318, %v364
      %v384 = vmul.f32 %v321, %v364
      %v385 = vmul.f32 %v324, %v364
      %v386 = vmul.f32 %v327, %v364
      %v387 = vmul.f32 %v330, %v364
      %v388 = vmul.f32 %v333, %v364
      %v389 = vmul.f32 %v336, %v364
      %v390 = vmul.f32 %v339, %v364
      %v391 = vmul.f32 %v342, %v364
      %v392 = vmul.f32 %v345, %v364
      %v393 = vmul.f32 %v348, %v364
      %v394 = vmul.f32 %v351, %v364
      %v395 = vmul.f32 %v354, %v364
      %v396 = vmul.f32 %v357, %v364
      %v397 = vmul.f32 %v360, %v364
      %v398 = vld [vmem:[%s3] sm:$0x1]
      %v400 = vperm.slane %v398, 0
      %v402 = vadd.f32 %v366, %v400
      %v403 = vadd.f32 %v367, %v400
      %v404 = vadd.f32 %v368, %v400
      %v405 = vadd.f32 %v369, %v400
      %v406 = vadd.f32 %v370, %v400
      %v407 = vadd.f32 %v371, %v400
      %v408 = vadd.f32 %v372, %v400
      %v409 = vadd.f32 %v373, %v400
      %v410 = vadd.f32 %v374, %v400
      %v411 = vadd.f32 %v375, %v400
      %v412 = vadd.f32 %v376, %v400
      %v413 = vadd.f32 %v377, %v400
      %v414 = vadd.f32 %v378, %v400
      %v415 = vadd.f32 %v379, %v400
      %v416 = vadd.f32 %v380, %v400
      %v417 = vadd.f32 %v381, %v400
      %v418 = vadd.f32 %v382, %v400
      %v419 = vadd.f32 %v383, %v400
      %v420 = vadd.f32 %v384, %v400
      %v421 = vadd.f32 %v385, %v400
      %v422 = vadd.f32 %v386, %v400
      %v423 = vadd.f32 %v387, %v400
      %v424 = vadd.f32 %v388, %v400
      %v425 = vadd.f32 %v389, %v400
      %v426 = vadd.f32 %v390, %v400
      %v427 = vadd.f32 %v391, %v400
      %v428 = vadd.f32 %v392, %v400
      %v429 = vadd.f32 %v393, %v400
      %v430 = vadd.f32 %v394, %v400
      %v431 = vadd.f32 %v395, %v400
      %v432 = vadd.f32 %v396, %v400
      %v433 = vadd.f32 %v397, %v400
      %v434 = vmul.f32 %v402, 0.1
      %v435 = vmul.f32 %v403, 0.1
      %v436 = vmul.f32 %v404, 0.1
      %v437 = vmul.f32 %v405, 0.1
      %v438 = vmul.f32 %v406, 0.1
      %v439 = vmul.f32 %v407, 0.1
      %v440 = vmul.f32 %v408, 0.1
      %v441 = vmul.f32 %v409, 0.1
      %v442 = vmul.f32 %v410, 0.1
      %v443 = vmul.f32 %v411, 0.1
      %v444 = vmul.f32 %v412, 0.1
      %v445 = vmul.f32 %v413, 0.1
      %v446 = vmul.f32 %v414, 0.1
      %v447 = vmul.f32 %v415, 0.1
      %v448 = vmul.f32 %v416, 0.1
      %v449 = vmul.f32 %v417, 0.1
      %v450 = vmul.f32 %v418, 0.1
      %v451 = vmul.f32 %v419, 0.1
      %v452 = vmul.f32 %v420, 0.1
      %v453 = vmul.f32 %v421, 0.1
      %v454 = vmul.f32 %v422, 0.1
      %v455 = vmul.f32 %v423, 0.1
      %v456 = vmul.f32 %v424, 0.1
      %v457 = vmul.f32 %v425, 0.1
      %v458 = vmul.f32 %v426, 0.1
      %v459 = vmul.f32 %v427, 0.1
      %v460 = vmul.f32 %v428, 0.1
      %v461 = vmul.f32 %v429, 0.1
      %v462 = vmul.f32 %v430, 0.1
      %v463 = vmul.f32 %v431, 0.1
      %v464 = vmul.f32 %v432, 0.1
      %v465 = vmul.f32 %v433, 0.1
      %v466 = vmax.f32 %v402, %v434
      %v467 = vmax.f32 %v403, %v435
      %v468 = vmax.f32 %v404, %v436
      %v469 = vmax.f32 %v405, %v437
      %v470 = vmax.f32 %v406, %v438
      %v471 = vmax.f32 %v407, %v439
      %v472 = vmax.f32 %v408, %v440
      %v473 = vmax.f32 %v409, %v441
      %v474 = vmax.f32 %v410, %v442
      %v475 = vmax.f32 %v411, %v443
      %v476 = vmax.f32 %v412, %v444
      %v477 = vmax.f32 %v413, %v445
      %v478 = vmax.f32 %v414, %v446
      %v479 = vmax.f32 %v415, %v447
      %v480 = vmax.f32 %v416, %v448
      %v481 = vmax.f32 %v417, %v449
      %v482 = vmax.f32 %v418, %v450
      %v483 = vmax.f32 %v419, %v451
      %v484 = vmax.f32 %v420, %v452
      %v485 = vmax.f32 %v421, %v453
      %v486 = vmax.f32 %v422, %v454
      %v487 = vmax.f32 %v423, %v455
      %v488 = vmax.f32 %v424, %v456
      %v489 = vmax.f32 %v425, %v457
      %v490 = vmax.f32 %v426, %v458
      %v491 = vmax.f32 %v427, %v459
      %v492 = vmax.f32 %v428, %v460
      %v493 = vmax.f32 %v429, %v461
      %v494 = vmax.f32 %v430, %v462
      %v495 = vmax.f32 %v431, %v463
      %v496 = vmax.f32 %v432, %v464
      %v497 = vmax.f32 %v433, %v465
      %498 = vst [vmem:[%s199] sm:$0xff] %v466
      %499 = vst [vmem:[%s199 + $0x8] sm:$0xff] %v467
      %500 = vst [vmem:[%s199 + $0x10] sm:$0xff] %v468
      %501 = vst [vmem:[%s199 + $0x18] sm:$0xff] %v469
      %502 = vst [vmem:[%s199 + $0x20] sm:$0xff] %v470
      %503 = vst [vmem:[%s199 + $0x28] sm:$0xff] %v471
      %504 = vst [vmem:[%s199 + $0x30] sm:$0xff] %v472
      %505 = vst [vmem:[%s199 + $0x38] sm:$0xff] %v473
      %506 = vst [vmem:[%s199 + $0x40] sm:$0xff] %v474
      %507 = vst [vmem:[%s199 + $0x48] sm:$0xff] %v475
      %508 = vst [vmem:[%s199 + $0x50] sm:$0xff] %v476
      %509 = vst [vmem:[%s199 + $0x58] sm:$0xff] %v477
      %510 = vst [vmem:[%s199 + $0x60] sm:$0xff] %v478
      %511 = vst [vmem:[%s199 + $0x68] sm:$0xff] %v479
      %512 = vst [vmem:[%s199 + $0x70] sm:$0xff] %v480
      %513 = vst [vmem:[%s199 + $0x78] sm:$0xff] %v481
      %514 = vst [vmem:[%s199 + $0x80] sm:$0xff] %v482
      %515 = vst [vmem:[%s199 + $0x88] sm:$0xff] %v483
      %516 = vst [vmem:[%s199 + $0x90] sm:$0xff] %v484
      %517 = vst [vmem:[%s199 + $0x98] sm:$0xff] %v485
      %518 = vst [vmem:[%s199 + $0xa0] sm:$0xff] %v486
      %519 = vst [vmem:[%s199 + $0xa8] sm:$0xff] %v487
      %520 = vst [vmem:[%s199 + $0xb0] sm:$0xff] %v488
      %521 = vst [vmem:[%s199 + $0xb8] sm:$0xff] %v489
      %522 = vst [vmem:[%s199 + $0xc0] sm:$0xff] %v490
      %523 = vst [vmem:[%s199 + $0xc8] sm:$0xff] %v491
      %524 = vst [vmem:[%s199 + $0xd0] sm:$0xff] %v492
      %525 = vst [vmem:[%s199 + $0xd8] sm:$0xff] %v493
      %526 = vst [vmem:[%s199 + $0xe0] sm:$0xff] %v494
      %527 = vst [vmem:[%s199 + $0xe8] sm:$0xff] %v495
      %528 = vst [vmem:[%s199 + $0xf0] sm:$0xff] %v496
      %529 = vst [vmem:[%s199 + $0xf8] sm:$0xff] %v497
      %s530 = smul.u32 32, %s15
      %p531 = scmp.lt.s32.totalorder %s530, 63
      %s532 = scalar_select %p531, %s530, 63
      %s533 = smul.addr %s532, 8
      %s534 = scalar_lea.vmem %s4, %s533
      // Predicated region
      $region37: #{dbl_forward.3} parent=35 // pred_check
        %p535 = pneg %p122
      $region38: #{dbl_forward.3} parent=35 // pred_check_branch
        %537 = sbr.rel (%p535) target = $region40
      $region39: #{dbl_forward.3} parent=35 // pred_region
        %s538 = smul.u32 32, %s15
      $region40: #{dbl_forward.3} parent=35 // pred_fallthru
        _
    $region36: #{dbl_forward.3} parent=5 // pred_fallthru
      _
    %p539 = scmp.le.s32.totalorder 2, %s10
    // Predicated region
    $region41: #{dbl_forward.3} parent=5 // pred_check
      %p540 = pneg %p539
    $region42: #{dbl_forward.3} parent=5 // pred_check_branch
      %542 = sbr.rel (%p540) target = $region44
    $region43: #{dbl_forward.3} parent=5 // pred_region
      %s543 = ssub.s32 %s10, 2
      // Predicated region
      $region45: #{dbl_forward.3} parent=43 // pred_check
        %p544 = pneg %p128
      $region46: #{dbl_forward.3} parent=43 // pred_check_branch
        %546 = sbr.rel (%p544) target = $region48
      $region47: #{dbl_forward.3} parent=43 // pred_region
        %s547 = smul.u32 32, %s16
        %p548 = scmp.lt.s32.totalorder %s547, 63
        %s549 = scalar_select %p548, %s547, 63
        %s550 = smul.addr %s549, 8
        %s551 = scalar_lea.vmem %s4, %s550
      $region48: #{dbl_forward.3} parent=43 // pred_fallthru
        _
    $region44: #{dbl_forward.3} parent=5 // pred_fallthru
      _
  $region6: #{dbl_forward.3} parent=0 // loop_footer
    %s14 = sadd.s32 1, %s10
  $region7: #{dbl_forward.3} parent=0 // loop_footer_branch
    %9 = sbr.rel target = $region3
  $region8: #{dbl_forward.3} parent=0 // loop_exit
    _

</llo_original>
